<compile_context>
chip_gen: v6e
topology: v6e:2x2x1
jax: 0.10.0
libtpu: 0.0.40
codegen_flags: <defaults>
</compile_context>

<pallas_src>
import functools

import numpy as np
import jax
import jax.numpy as jnp
from jax.experimental import pallas as pl
from jax.experimental.pallas import tpu as pltpu


# ----------------------------------------------------------------------------
# Autoregressive mask construction (direct numpy port of the PyTorch helpers)
# ----------------------------------------------------------------------------
def channel_mask(c_in, g_in, c_out, zero_diag):
    assert c_in % c_out == 0 or c_out % c_in == 0, '%d - %d' % (c_in, c_out)
    assert g_in == 1 or g_in == c_in
    if g_in == 1:
        mask = np.ones([c_out, c_in], dtype=np.float32)
        if c_out >= c_in:
            ratio = c_out // c_in
            for i in range(c_in):
                mask[i * ratio:(i + 1) * ratio, i + 1:] = 0
                if zero_diag:
                    mask[i * ratio:(i + 1) * ratio, i:i + 1] = 0
        else:
            ratio = c_in // c_out
            for i in range(c_out):
                mask[i:i + 1, (i + 1) * ratio:] = 0
                if zero_diag:
                    mask[i:i + 1, i * ratio:(i + 1) * ratio] = 0
    elif g_in == c_in:
        mask = np.ones([c_out, c_in // g_in], dtype=np.float32)
        if zero_diag:
            mask = 0.0 * mask
    return mask


def create_conv_mask(kernel_size, c_in, g_in, c_out, zero_diag, mirror):
    m = (kernel_size - 1) // 2
    mask = np.ones([c_out, c_in // g_in, kernel_size, kernel_size], dtype=np.float32)
    mask[:, :, m:, :] = 0
    mask[:, :, m, :m] = 1
    mask[:, :, m, m] = channel_mask(c_in, g_in, c_out, zero_diag)
    if mirror:
        mask = np.copy(mask[:, :, ::-1, ::-1])
    return mask


# ----------------------------------------------------------------------------
# Weight normalization (equivalent of ARConv2d.normalize_weight with the
# freshly-initialized log_weight_norm parameter: log(||w*mask|| + 0.01))
# ----------------------------------------------------------------------------
def normalize_masked_weight(w_oihw, mask_oihw):
    wm = w_oihw * mask_oihw
    n = jnp.sqrt(jnp.sum(wm * wm, axis=(1, 2, 3)))          # per-output-filter norm
    log_weight_norm = jnp.log(n + 0.01)                      # nn.Parameter init
    scale = jnp.exp(log_weight_norm)
    return scale[:, None, None, None] * wm / (n[:, None, None, None] + 1e-5)


# ----------------------------------------------------------------------------
# Helpers
# ----------------------------------------------------------------------------
def _elu(x):
    # NOTE: jnp.expm1 would be marginally more accurate for x just below 0, but its
    # Mosaic lowering is not guaranteed across jax versions; exp(x)-1 differs from
    # expm1 by <= ~1.2e-7 absolute, far below the check tolerance.
    return jnp.where(x > 0, x, jnp.exp(x) - 1.0)


def _round_up(x, m):
    return (x + m - 1) // m * m


def _position_masks(H, W, taps):
    """f32 (len(taps), H*W) validity masks for flat-spatial tap offsets (di, dj)."""
    HW = H * W
    p = np.arange(HW)
    row, col = p // W, p % W
    out = np.zeros((len(taps), HW), np.float32)
    for t, (di, dj) in enumerate(taps):
        out[t] = ((row + di >= 0) & (row + di < H) &
                  (col + dj >= 0) & (col + dj < W)).astype(np.float32)
    return out


# ----------------------------------------------------------------------------
# Fused Pallas kernel
# ----------------------------------------------------------------------------
def _fused_ar_inverted_residual_kernel(
        z_ref, w1_ref, w2_ref, m1_ref, mcol_ref, mrow_ref,   # inputs
        o_ref,                                               # output
        patch_ref,                                           # VMEM scratch
        *, H, W, C_pad, C_hid, k, dil):
    """One batch element per grid step.  Channel-major, flat spatial on lanes.

    z_ref:     (1, C_pad, H*W)   input, channels zero-padded to a full 8-sublane block
    w1_ref:    (C_hid, 9*C_pad)  bf16 dense 3x3 weight, columns (kh, kw, c) per tap,
                                 zero-padded c >= C_in
    w2_ref:    (C_hid, k*k)      f32 depthwise weight, columns ordered (kh, kw)
    m1_ref:    (9, H*W)          per-tap combined row+col validity masks (stage 1)
    mcol_ref:  (k, H*W)          per-dj column validity masks (stage 2)
    mrow_ref:  (k, H*W)          per-di row validity masks (stage 2)
    o_ref:     (1, C_hid, H*W)   output
    patch_ref: (9*C_pad, H*W)    f32 im2col matrix (tile-aligned 8-sublane tap blocks)
    """
    f32 = jnp.float32
    HW = H * W
    padK = dil * (k - 1) // 2

    # ============ stage 1: dense masked 3x3 conv + ELU (single MXU matmul) ============
    z8 = z_ref[0]                                            # (C_pad, HW) f32
    for kh in range(3):
        for kw in range(3):
            t = kh * 3 + kw
            s = (kh - 1) * W + (kw - 1)                      # flat tap offset
            # win[p] = z8[p + s] for valid positions (roll is circular; the mask zeroes
            # both the W wrap-around and the H boundary / flat wrap positions).
            win = z8 if s == 0 else pltpu.roll(z8, shift=(-s) % HW, axis=1)
            win = win * m1_ref[t:t + 1, :]
            patch_ref[t * C_pad:(t + 1) * C_pad, :] = win    # tile-aligned 8-row store
    h1 = jnp.dot(w1_ref[...], patch_ref[...].astype(jnp.bfloat16),
                 preferred_element_type=f32)                 # (C_hid, HW), K = 9*C_pad
    hidden = _elu(h1)                                        # f32, stays vreg/VMEM local

    # ============ stage 2: depthwise masked kxk conv + ELU (lane-dense VPU) ===========
    w2 = w2_ref[...]                                         # (C_hid, k*k) f32
    # Column-rolled, column-masked bases: one per horizontal offset dj (k mask muls).
    bases = []
    for j in range(k):
        dj = j * dil - padK
        b = hidden if dj == 0 else pltpu.roll(hidden, shift=(-dj) % HW, axis=1)
        if dj != 0:
            b = b * mcol_ref[j:j + 1, :]
        bases.append(b)
    acc = jnp.zeros((C_hid, HW), f32)
    for i in range(k):
        di = i * dil - padK
        rs = (-(di * W)) % HW                                # whole-row roll amount
        grp = jnp.zeros((C_hid, HW), f32)
        for j in range(k):
            rb = bases[j] if rs == 0 else pltpu.roll(bases[j], shift=rs, axis=1)
            grp = grp + rb * w2[:, i * k + j:i * k + j + 1]  # per-channel tap weight
        if di != 0:
            grp = grp * mrow_ref[i:i + 1, :]                 # one row mask per group
        acc = acc + grp
    o_ref[0] = _elu(acc).astype(o_ref.dtype)


# ----------------------------------------------------------------------------
# Wrapper
# ----------------------------------------------------------------------------
def ar_inverted_residual_forward(z_nchw, ftr, w1_norm_oihw, w2_norm_oihw, k, dil):
    """z: (B, inz, H, W) NCHW -> (B, hidden, H, W) NCHW.  `ftr` is unused (as in PyTorch)."""
    del ftr  # unused by the PyTorch module's forward
    B, C_in, H, W = z_nchw.shape
    C_hid = w1_norm_oihw.shape[0]
    assert w1_norm_oihw.shape == (C_hid, C_in, 3, 3)
    assert w2_norm_oihw.shape == (C_hid, 1, k, k)
    HW = H * W
    padK = dil * (k - 1) // 2
    assert HW % 128 == 0, "flat spatial axis (H*W) must be a multiple of 128 lanes"

    # Pad input channels up to a full 8-sublane block so every im2col tap store is
    # (8,128)-tile aligned (review item #1); padded channels / weight columns are zero.
    C_pad = _round_up(C_in, 8)
    z_flat = z_nchw.reshape(B, C_in, HW).astype(jnp.float32)
    if C_pad != C_in:
        z_flat = jnp.pad(z_flat, ((0, 0), (0, C_pad - C_in), (0, 0)))

    # Stage-1 weight: (O,I,3,3) -> (O,kh,kw,I) -> pad I to C_pad -> (O, 9*C_pad), bf16
    # so the MXU runs at its native bf16 rate (accumulation stays f32 via
    # preferred_element_type).
    w1_t = jnp.transpose(w1_norm_oihw, (0, 2, 3, 1))
    if C_pad != C_in:
        w1_t = jnp.pad(w1_t, ((0, 0), (0, 0), (0, 0), (0, C_pad - C_in)))
    w1_mat = w1_t.reshape(C_hid, 9 * C_pad).astype(jnp.bfloat16)

    # Stage-2 depthwise weight stays f32 (VPU path; v5e has no bf16 VALU).
    w2_mat = w2_norm_oihw.reshape(C_hid, k * k).astype(jnp.float32)

    # Precomputed boundary-validity lane masks (hoisted out of the grid loop).
    m1 = jnp.asarray(_position_masks(
        H, W, [(kh - 1, kw - 1) for kh in range(3) for kw in range(3)]))
    mcol = jnp.asarray(_position_masks(H, W, [(0, j * dil - padK) for j in range(k)]))
    mrow = jnp.asarray(_position_masks(H, W, [(i * dil - padK, 0) for i in range(k)]))

    kernel = functools.partial(
        _fused_ar_inverted_residual_kernel,
        H=H, W=W, C_pad=C_pad, C_hid=C_hid, k=k, dil=dil)

    out_flat = pl.pallas_call(
        kernel,
        out_shape=jax.ShapeDtypeStruct((B, C_hid, HW), z_nchw.dtype),
        grid=(B,),
        in_specs=[
            pl.BlockSpec((1, C_pad, HW), lambda b: (b, 0, 0)),
            pl.BlockSpec((C_hid, 9 * C_pad), lambda b: (0, 0)),
            pl.BlockSpec((C_hid, k * k), lambda b: (0, 0)),
            pl.BlockSpec((9, HW), lambda b: (0, 0)),
            pl.BlockSpec((k, HW), lambda b: (0, 0)),
            pl.BlockSpec((k, HW), lambda b: (0, 0)),
        ],
        out_specs=pl.BlockSpec((1, C_hid, HW), lambda b: (b, 0, 0)),
        scratch_shapes=[
            pltpu.VMEM((9 * C_pad, HW), jnp.float32),   # im2col patches (aligned stores)
        ],
        compiler_params=pltpu.CompilerParams(
            dimension_semantics=("parallel",)),   # batch split across v7x's 2 TensorCores
    )(z_flat, w1_mat, w2_mat, m1, mcol, mrow)

    # TODO(synk): for production NVAE sizes, pack several batch elements / H-strips onto
    # the lane axis per grid step (widens the MXU N well beyond 256), add an H-strip
    # "parallel" grid axis with a padK-row halo so both v7x TensorCores stay busy when
    # B<=2, and set vmem_limit_bytes against v7x's 64 MiB VMEM (v5e's 16 MiB default).
    return out_flat.reshape(B, C_hid, H, W)


# ----------------------------------------------------------------------------
# Pure-JAX reference (for a correctness check)
# ----------------------------------------------------------------------------
def reference_forward(z_nchw, w1_norm, w2_norm, k, dil):
    x = jax.lax.conv_general_dilated(
        z_nchw, w1_norm, window_strides=(1, 1), padding=((1, 1), (1, 1)),
        dimension_numbers=('NCHW', 'OIHW', 'NCHW'), precision='highest')
    x = jax.nn.elu(x)
    p = dil * (k - 1) // 2
    x = jax.lax.conv_general_dilated(
        x, w2_norm, window_strides=(1, 1), padding=((p, p), (p, p)),
        rhs_dilation=(dil, dil), feature_group_count=w2_norm.shape[0],
        dimension_numbers=('NCHW', 'OIHW', 'NCHW'), precision='highest')
    x = jax.nn.elu(x)
    return x


if __name__ == "__main__":
    # Module hyperparameters (small, consistent with the module's __init__).
    inz, inf = 4, 4
    ex, dil, k, mirror = 6, 1, 5, False
    hidden_dim = int(round(inz * ex))         # 24
    B, H, W = 2, 16, 16

    key = jax.random.PRNGKey(0)
    kz, kf, kw1, kw2 = jax.random.split(key, 4)

    # Inputs (PyTorch NCHW convention).
    z = jax.random.normal(kz, (B, inz, H, W), dtype=jnp.float32)
    ftr = jax.random.normal(kf, (B, inf, H, W), dtype=jnp.float32)   # unused by forward

    # Deterministic parameter init (shapes per nn.Conv2d in __init__; bias=False).
    w1 = jax.random.normal(kw1, (hidden_dim, inz, 3, 3), dtype=jnp.float32) * 0.1
    w2 = jax.random.normal(kw2, (hidden_dim, 1, k, k), dtype=jnp.float32) * 0.1

    # Autoregressive masks and weight normalization (ARConv2d.normalize_weight).
    mask1 = jnp.asarray(create_conv_mask(3, inz, 1, hidden_dim, True, mirror))
    mask2 = jnp.asarray(create_conv_mask(k, hidden_dim, hidden_dim, hidden_dim, False, mirror))
    w1_norm = normalize_masked_weight(w1, mask1)
    w2_norm = normalize_masked_weight(w2, mask2)

    # Pallas forward.
    out = ar_inverted_residual_forward(z, ftr, w1_norm, w2_norm, k, dil)
    out = jax.block_until_ready(out)

    # Correctness check against the pure-JAX reference (computed at f32-highest).
    # The kernel's 3x3 stage feeds the MXU bf16 operands (f32 accumulation), so allow
    # bf16-input-rounding-level differences; stage 2 is exact f32 VPU math.
    ref = jax.block_until_ready(reference_forward(z, w1_norm, w2_norm, k, dil))
    assert out.shape == (B, hidden_dim, H, W), out.shape
    np.testing.assert_allclose(np.asarray(out), np.asarray(ref), rtol=2e-2, atol=2e-2)

    print("KERNEL_OK")
</pallas_src>

<mosaic_0001>
module attributes {stable_mosaic.version = 11 : i64} {
  func.func @_fused_ar_inverted_residual_kernel(%arg0: i32, %arg1: memref<1x8x256xf32, #tpu.memory_space<vmem>>, %arg2: memref<24x72xbf16, #tpu.memory_space<vmem>>, %arg3: memref<24x25xf32, #tpu.memory_space<vmem>>, %arg4: memref<9x256xf32, #tpu.memory_space<vmem>>, %arg5: memref<5x256xf32, #tpu.memory_space<vmem>>, %arg6: memref<5x256xf32, #tpu.memory_space<vmem>>, %arg7: memref<1x24x256xf32, #tpu.memory_space<vmem>>, %arg8: memref<72x256xf32, #tpu.memory_space<vmem>>) attributes {dimension_semantics = [#tpu.dimension_semantics<parallel>], iteration_bounds = array<i64: 2>, scalar_prefetch = 0 : i64, scratch_operands = 1 : i64, tpu.core_type = #tpu.core_type<tc>, window_params = [{transform_indices = @transform_0, window_bounds = array<i64: 1, 8, 256>}, {pipeline_mode = #tpu.pipeline_mode<synchronous>, transform_indices = @transform_1, window_bounds = array<i64: 24, 72>}, {pipeline_mode = #tpu.pipeline_mode<synchronous>, transform_indices = @transform_2, window_bounds = array<i64: 24, 25>}, {pipeline_mode = #tpu.pipeline_mode<synchronous>, transform_indices = @transform_3, window_bounds = array<i64: 9, 256>}, {pipeline_mode = #tpu.pipeline_mode<synchronous>, transform_indices = @transform_4, window_bounds = array<i64: 5, 256>}, {pipeline_mode = #tpu.pipeline_mode<synchronous>, transform_indices = @transform_5, window_bounds = array<i64: 5, 256>}, {transform_indices = @transform_6, window_bounds = array<i64: 1, 24, 256>}]} {
    %c0 = arith.constant 0 : index
    %c0_0 = arith.constant 0 : index
    %c0_1 = arith.constant 0 : index
    %0 = vector.load %arg1[%c0, %c0_0, %c0_1] : memref<1x8x256xf32, #tpu.memory_space<vmem>>, vector<1x8x256xf32>
    %1 = vector.shape_cast %0 : vector<1x8x256xf32> to vector<8x256xf32>
    %c17_i32 = arith.constant 17 : i32
    %2 = tpu.dynamic_rotate %1 by %c17_i32 dim 1 : vector<8x256xf32>, i32 -> vector<8x256xf32>
    %c0_2 = arith.constant 0 : index
    %c0_3 = arith.constant 0 : index
    %3 = vector.load %arg4[%c0_2, %c0_3] : memref<9x256xf32, #tpu.memory_space<vmem>>, vector<1x256xf32>
    %4 = vector.broadcast %3 : vector<1x256xf32> to vector<8x256xf32>
    %5 = arith.mulf %2, %4 : vector<8x256xf32>
    %c0_4 = arith.constant 0 : index
    %c0_5 = arith.constant 0 : index
    %6 = vector.load %arg8[%c0_4, %c0_5] : memref<72x256xf32, #tpu.memory_space<vmem>>, vector<8x256xf32>
    tpu.vector_store %arg8[%c0_4, %c0_5], %5 {strides = array<i32>} : memref<72x256xf32, #tpu.memory_space<vmem>>, vector<8x256xf32>,
    %c16_i32 = arith.constant 16 : i32
    %7 = tpu.dynamic_rotate %1 by %c16_i32 dim 1 : vector<8x256xf32>, i32 -> vector<8x256xf32>
    %c1 = arith.constant 1 : index
    %c0_6 = arith.constant 0 : index
    %8 = vector.load %arg4[%c1, %c0_6] : memref<9x256xf32, #tpu.memory_space<vmem>>, vector<1x256xf32>
    %9 = vector.broadcast %8 : vector<1x256xf32> to vector<8x256xf32>
    %10 = arith.mulf %7, %9 : vector<8x256xf32>
    %c8 = arith.constant 8 : index
    %c0_7 = arith.constant 0 : index
    %11 = vector.load %arg8[%c8, %c0_7] : memref<72x256xf32, #tpu.memory_space<vmem>>, vector<8x256xf32>
    tpu.vector_store %arg8[%c8, %c0_7], %10 {strides = array<i32>} : memref<72x256xf32, #tpu.memory_space<vmem>>, vector<8x256xf32>,
    %c15_i32 = arith.constant 15 : i32
    %12 = tpu.dynamic_rotate %1 by %c15_i32 dim 1 : vector<8x256xf32>, i32 -> vector<8x256xf32>
    %c2 = arith.constant 2 : index
    %c0_8 = arith.constant 0 : index
    %13 = vector.load %arg4[%c2, %c0_8] : memref<9x256xf32, #tpu.memory_space<vmem>>, vector<1x256xf32>
    %14 = vector.broadcast %13 : vector<1x256xf32> to vector<8x256xf32>
    %15 = arith.mulf %12, %14 : vector<8x256xf32>
    %c16 = arith.constant 16 : index
    %c0_9 = arith.constant 0 : index
    %16 = vector.load %arg8[%c16, %c0_9] : memref<72x256xf32, #tpu.memory_space<vmem>>, vector<8x256xf32>
    tpu.vector_store %arg8[%c16, %c0_9], %15 {strides = array<i32>} : memref<72x256xf32, #tpu.memory_space<vmem>>, vector<8x256xf32>,
    %c1_i32 = arith.constant 1 : i32
    %17 = tpu.dynamic_rotate %1 by %c1_i32 dim 1 : vector<8x256xf32>, i32 -> vector<8x256xf32>
    %c3 = arith.constant 3 : index
    %c0_10 = arith.constant 0 : index
    %18 = vector.load %arg4[%c3, %c0_10] : memref<9x256xf32, #tpu.memory_space<vmem>>, vector<1x256xf32>
    %19 = vector.broadcast %18 : vector<1x256xf32> to vector<8x256xf32>
    %20 = arith.mulf %17, %19 : vector<8x256xf32>
    %c24 = arith.constant 24 : index
    %c0_11 = arith.constant 0 : index
    %21 = vector.load %arg8[%c24, %c0_11] : memref<72x256xf32, #tpu.memory_space<vmem>>, vector<8x256xf32>
    tpu.vector_store %arg8[%c24, %c0_11], %20 {strides = array<i32>} : memref<72x256xf32, #tpu.memory_space<vmem>>, vector<8x256xf32>,
    %c4 = arith.constant 4 : index
    %c0_12 = arith.constant 0 : index
    %22 = vector.load %arg4[%c4, %c0_12] : memref<9x256xf32, #tpu.memory_space<vmem>>, vector<1x256xf32>
    %23 = vector.broadcast %22 : vector<1x256xf32> to vector<8x256xf32>
    %24 = arith.mulf %1, %23 : vector<8x256xf32>
    %c32 = arith.constant 32 : index
    %c0_13 = arith.constant 0 : index
    %25 = vector.load %arg8[%c32, %c0_13] : memref<72x256xf32, #tpu.memory_space<vmem>>, vector<8x256xf32>
    tpu.vector_store %arg8[%c32, %c0_13], %24 {strides = array<i32>} : memref<72x256xf32, #tpu.memory_space<vmem>>, vector<8x256xf32>,
    %c255_i32 = arith.constant 255 : i32
    %26 = tpu.dynamic_rotate %1 by %c255_i32 dim 1 : vector<8x256xf32>, i32 -> vector<8x256xf32>
    %c5 = arith.constant 5 : index
    %c0_14 = arith.constant 0 : index
    %27 = vector.load %arg4[%c5, %c0_14] : memref<9x256xf32, #tpu.memory_space<vmem>>, vector<1x256xf32>
    %28 = vector.broadcast %27 : vector<1x256xf32> to vector<8x256xf32>
    %29 = arith.mulf %26, %28 : vector<8x256xf32>
    %c40 = arith.constant 40 : index
    %c0_15 = arith.constant 0 : index
    %30 = vector.load %arg8[%c40, %c0_15] : memref<72x256xf32, #tpu.memory_space<vmem>>, vector<8x256xf32>
    tpu.vector_store %arg8[%c40, %c0_15], %29 {strides = array<i32>} : memref<72x256xf32, #tpu.memory_space<vmem>>, vector<8x256xf32>,
    %c241_i32 = arith.constant 241 : i32
    %31 = tpu.dynamic_rotate %1 by %c241_i32 dim 1 : vector<8x256xf32>, i32 -> vector<8x256xf32>
    %c6 = arith.constant 6 : index
    %c0_16 = arith.constant 0 : index
    %32 = vector.load %arg4[%c6, %c0_16] : memref<9x256xf32, #tpu.memory_space<vmem>>, vector<1x256xf32>
    %33 = vector.broadcast %32 : vector<1x256xf32> to vector<8x256xf32>
    %34 = arith.mulf %31, %33 : vector<8x256xf32>
    %c48 = arith.constant 48 : index
    %c0_17 = arith.constant 0 : index
    %35 = vector.load %arg8[%c48, %c0_17] : memref<72x256xf32, #tpu.memory_space<vmem>>, vector<8x256xf32>
    tpu.vector_store %arg8[%c48, %c0_17], %34 {strides = array<i32>} : memref<72x256xf32, #tpu.memory_space<vmem>>, vector<8x256xf32>,
    %c240_i32 = arith.constant 240 : i32
    %36 = tpu.dynamic_rotate %1 by %c240_i32 dim 1 : vector<8x256xf32>, i32 -> vector<8x256xf32>
    %c7 = arith.constant 7 : index
    %c0_18 = arith.constant 0 : index
    %37 = vector.load %arg4[%c7, %c0_18] : memref<9x256xf32, #tpu.memory_space<vmem>>, vector<1x256xf32>
    %38 = vector.broadcast %37 : vector<1x256xf32> to vector<8x256xf32>
    %39 = arith.mulf %36, %38 : vector<8x256xf32>
    %c56 = arith.constant 56 : index
    %c0_19 = arith.constant 0 : index
    %40 = vector.load %arg8[%c56, %c0_19] : memref<72x256xf32, #tpu.memory_space<vmem>>, vector<8x256xf32>
    tpu.vector_store %arg8[%c56, %c0_19], %39 {strides = array<i32>} : memref<72x256xf32, #tpu.memory_space<vmem>>, vector<8x256xf32>,
    %c239_i32 = arith.constant 239 : i32
    %41 = tpu.dynamic_rotate %1 by %c239_i32 dim 1 : vector<8x256xf32>, i32 -> vector<8x256xf32>
    %c8_20 = arith.constant 8 : index
    %c0_21 = arith.constant 0 : index
    %42 = vector.load %arg4[%c8_20, %c0_21] : memref<9x256xf32, #tpu.memory_space<vmem>>, vector<1x256xf32>
    %43 = vector.broadcast %42 : vector<1x256xf32> to vector<8x256xf32>
    %44 = arith.mulf %41, %43 : vector<8x256xf32>
    %c64 = arith.constant 64 : index
    %c0_22 = arith.constant 0 : index
    %45 = vector.load %arg8[%c64, %c0_22] : memref<72x256xf32, #tpu.memory_space<vmem>>, vector<8x256xf32>
    tpu.vector_store %arg8[%c64, %c0_22], %44 {strides = array<i32>} : memref<72x256xf32, #tpu.memory_space<vmem>>, vector<8x256xf32>,
    %c0_23 = arith.constant 0 : index
    %c0_24 = arith.constant 0 : index
    %46 = vector.load %arg2[%c0_23, %c0_24] : memref<24x72xbf16, #tpu.memory_space<vmem>>, vector<24x72xbf16>
    %c0_25 = arith.constant 0 : index
    %c0_26 = arith.constant 0 : index
    %47 = vector.load %arg8[%c0_25, %c0_26] : memref<72x256xf32, #tpu.memory_space<vmem>>, vector<72x256xf32>
    %48 = arith.truncf %47 : vector<72x256xf32> to vector<72x256xbf16>
    %cst = arith.constant dense<0.000000e+00> : vector<24x256xf32>
    %49 = tpu.matmul %46, %48, %cst {dimension_numbers = #tpu.dot_dimension_numbers<[1], [0], [0], [1], [0, 0, 1, 1], [], []>} : vector<24x72xbf16>, vector<72x256xbf16>, vector<24x256xf32> -> vector<24x256xf32>
    %cst_27 = arith.constant 0.000000e+00 : f32
    %50 = vector.broadcast %cst_27 : f32 to vector<24x256xf32>
    %51 = arith.cmpf ogt, %49, %50 : vector<24x256xf32>
    %52 = math.exp %49 : vector<24x256xf32>
    %cst_28 = arith.constant 1.000000e+00 : f32
    %53 = vector.broadcast %cst_28 : f32 to vector<24x256xf32>
    %54 = arith.subf %52, %53 : vector<24x256xf32>
    %55 = arith.select %51, %49, %54 : vector<24x256xi1>, vector<24x256xf32>
    %c0_29 = arith.constant 0 : index
    %c0_30 = arith.constant 0 : index
    %56 = vector.load %arg3[%c0_29, %c0_30] : memref<24x25xf32, #tpu.memory_space<vmem>>, vector<24x25xf32>
    %c2_i32 = arith.constant 2 : i32
    %57 = tpu.dynamic_rotate %55 by %c2_i32 dim 1 : vector<24x256xf32>, i32 -> vector<24x256xf32>
    %c0_31 = arith.constant 0 : index
    %c0_32 = arith.constant 0 : index
    %58 = vector.load %arg5[%c0_31, %c0_32] : memref<5x256xf32, #tpu.memory_space<vmem>>, vector<1x256xf32>
    %59 = vector.broadcast %58 : vector<1x256xf32> to vector<24x256xf32>
    %60 = arith.mulf %57, %59 : vector<24x256xf32>
    %c1_i32_33 = arith.constant 1 : i32
    %61 = tpu.dynamic_rotate %55 by %c1_i32_33 dim 1 : vector<24x256xf32>, i32 -> vector<24x256xf32>
    %c1_34 = arith.constant 1 : index
    %c0_35 = arith.constant 0 : index
    %62 = vector.load %arg5[%c1_34, %c0_35] : memref<5x256xf32, #tpu.memory_space<vmem>>, vector<1x256xf32>
    %63 = vector.broadcast %62 : vector<1x256xf32> to vector<24x256xf32>
    %64 = arith.mulf %61, %63 : vector<24x256xf32>
    %c255_i32_36 = arith.constant 255 : i32
    %65 = tpu.dynamic_rotate %55 by %c255_i32_36 dim 1 : vector<24x256xf32>, i32 -> vector<24x256xf32>
    %c3_37 = arith.constant 3 : index
    %c0_38 = arith.constant 0 : index
    %66 = vector.load %arg5[%c3_37, %c0_38] : memref<5x256xf32, #tpu.memory_space<vmem>>, vector<1x256xf32>
    %67 = vector.broadcast %66 : vector<1x256xf32> to vector<24x256xf32>
    %68 = arith.mulf %65, %67 : vector<24x256xf32>
    %c254_i32 = arith.constant 254 : i32
    %69 = tpu.dynamic_rotate %55 by %c254_i32 dim 1 : vector<24x256xf32>, i32 -> vector<24x256xf32>
    %c4_39 = arith.constant 4 : index
    %c0_40 = arith.constant 0 : index
    %70 = vector.load %arg5[%c4_39, %c0_40] : memref<5x256xf32, #tpu.memory_space<vmem>>, vector<1x256xf32>
    %71 = vector.broadcast %70 : vector<1x256xf32> to vector<24x256xf32>
    %72 = arith.mulf %69, %71 : vector<24x256xf32>
    %cst_41 = arith.constant 0.000000e+00 : f32
    %73 = vector.broadcast %cst_41 : f32 to vector<24x256xf32>
    %cst_42 = arith.constant 0.000000e+00 : f32
    %74 = vector.broadcast %cst_42 : f32 to vector<24x256xf32>
    %c32_i32 = arith.constant 32 : i32
    %75 = tpu.dynamic_rotate %60 by %c32_i32 dim 1 : vector<24x256xf32>, i32 -> vector<24x256xf32>
    %76 = vector.extract_strided_slice %56 {offsets = [0, 0], sizes = [24, 1], strides = [1, 1]} : vector<24x25xf32> to vector<24x1xf32>
    %77 = vector.broadcast %76 : vector<24x1xf32> to vector<24x256xf32>
    %78 = arith.mulf %75, %77 : vector<24x256xf32>
    %79 = arith.addf %74, %78 : vector<24x256xf32>
    %c32_i32_43 = arith.constant 32 : i32
    %80 = tpu.dynamic_rotate %64 by %c32_i32_43 dim 1 : vector<24x256xf32>, i32 -> vector<24x256xf32>
    %81 = vector.extract_strided_slice %56 {offsets = [0, 1], sizes = [24, 1], strides = [1, 1]} : vector<24x25xf32> to vector<24x1xf32>
    %82 = vector.broadcast %81 : vector<24x1xf32> to vector<24x256xf32>
    %83 = arith.mulf %80, %82 : vector<24x256xf32>
    %84 = arith.addf %79, %83 : vector<24x256xf32>
    %c32_i32_44 = arith.constant 32 : i32
    %85 = tpu.dynamic_rotate %55 by %c32_i32_44 dim 1 : vector<24x256xf32>, i32 -> vector<24x256xf32>
    %86 = vector.extract_strided_slice %56 {offsets = [0, 2], sizes = [24, 1], strides = [1, 1]} : vector<24x25xf32> to vector<24x1xf32>
    %87 = vector.broadcast %86 : vector<24x1xf32> to vector<24x256xf32>
    %88 = arith.mulf %85, %87 : vector<24x256xf32>
    %89 = arith.addf %84, %88 : vector<24x256xf32>
    %c32_i32_45 = arith.constant 32 : i32
    %90 = tpu.dynamic_rotate %68 by %c32_i32_45 dim 1 : vector<24x256xf32>, i32 -> vector<24x256xf32>
    %91 = vector.extract_strided_slice %56 {offsets = [0, 3], sizes = [24, 1], strides = [1, 1]} : vector<24x25xf32> to vector<24x1xf32>
    %92 = vector.broadcast %91 : vector<24x1xf32> to vector<24x256xf32>
    %93 = arith.mulf %90, %92 : vector<24x256xf32>
    %94 = arith.addf %89, %93 : vector<24x256xf32>
    %c32_i32_46 = arith.constant 32 : i32
    %95 = tpu.dynamic_rotate %72 by %c32_i32_46 dim 1 : vector<24x256xf32>, i32 -> vector<24x256xf32>
    %96 = vector.extract_strided_slice %56 {offsets = [0, 4], sizes = [24, 1], strides = [1, 1]} : vector<24x25xf32> to vector<24x1xf32>
    %97 = vector.broadcast %96 : vector<24x1xf32> to vector<24x256xf32>
    %98 = arith.mulf %95, %97 : vector<24x256xf32>
    %99 = arith.addf %94, %98 : vector<24x256xf32>
    %c0_47 = arith.constant 0 : index
    %c0_48 = arith.constant 0 : index
    %100 = vector.load %arg6[%c0_47, %c0_48] : memref<5x256xf32, #tpu.memory_space<vmem>>, vector<1x256xf32>
    %101 = vector.broadcast %100 : vector<1x256xf32> to vector<24x256xf32>
    %102 = arith.mulf %99, %101 : vector<24x256xf32>
    %103 = arith.addf %73, %102 : vector<24x256xf32>
    %cst_49 = arith.constant 0.000000e+00 : f32
    %104 = vector.broadcast %cst_49 : f32 to vector<24x256xf32>
    %c16_i32_50 = arith.constant 16 : i32
    %105 = tpu.dynamic_rotate %60 by %c16_i32_50 dim 1 : vector<24x256xf32>, i32 -> vector<24x256xf32>
    %106 = vector.extract_strided_slice %56 {offsets = [0, 5], sizes = [24, 1], strides = [1, 1]} : vector<24x25xf32> to vector<24x1xf32>
    %107 = vector.broadcast %106 : vector<24x1xf32> to vector<24x256xf32>
    %108 = arith.mulf %105, %107 : vector<24x256xf32>
    %109 = arith.addf %104, %108 : vector<24x256xf32>
    %c16_i32_51 = arith.constant 16 : i32
    %110 = tpu.dynamic_rotate %64 by %c16_i32_51 dim 1 : vector<24x256xf32>, i32 -> vector<24x256xf32>
    %111 = vector.extract_strided_slice %56 {offsets = [0, 6], sizes = [24, 1], strides = [1, 1]} : vector<24x25xf32> to vector<24x1xf32>
    %112 = vector.broadcast %111 : vector<24x1xf32> to vector<24x256xf32>
    %113 = arith.mulf %110, %112 : vector<24x256xf32>
    %114 = arith.addf %109, %113 : vector<24x256xf32>
    %c16_i32_52 = arith.constant 16 : i32
    %115 = tpu.dynamic_rotate %55 by %c16_i32_52 dim 1 : vector<24x256xf32>, i32 -> vector<24x256xf32>
    %116 = vector.extract_strided_slice %56 {offsets = [0, 7], sizes = [24, 1], strides = [1, 1]} : vector<24x25xf32> to vector<24x1xf32>
    %117 = vector.broadcast %116 : vector<24x1xf32> to vector<24x256xf32>
    %118 = arith.mulf %115, %117 : vector<24x256xf32>
    %119 = arith.addf %114, %118 : vector<24x256xf32>
    %c16_i32_53 = arith.constant 16 : i32
    %120 = tpu.dynamic_rotate %68 by %c16_i32_53 dim 1 : vector<24x256xf32>, i32 -> vector<24x256xf32>
    %121 = vector.extract_strided_slice %56 {offsets = [0, 8], sizes = [24, 1], strides = [1, 1]} : vector<24x25xf32> to vector<24x1xf32>
    %122 = vector.broadcast %121 : vector<24x1xf32> to vector<24x256xf32>
    %123 = arith.mulf %120, %122 : vector<24x256xf32>
    %124 = arith.addf %119, %123 : vector<24x256xf32>
    %c16_i32_54 = arith.constant 16 : i32
    %125 = tpu.dynamic_rotate %72 by %c16_i32_54 dim 1 : vector<24x256xf32>, i32 -> vector<24x256xf32>
    %126 = vector.extract_strided_slice %56 {offsets = [0, 9], sizes = [24, 1], strides = [1, 1]} : vector<24x25xf32> to vector<24x1xf32>
    %127 = vector.broadcast %126 : vector<24x1xf32> to vector<24x256xf32>
    %128 = arith.mulf %125, %127 : vector<24x256xf32>
    %129 = arith.addf %124, %128 : vector<24x256xf32>
    %c1_55 = arith.constant 1 : index
    %c0_56 = arith.constant 0 : index
    %130 = vector.load %arg6[%c1_55, %c0_56] : memref<5x256xf32, #tpu.memory_space<vmem>>, vector<1x256xf32>
    %131 = vector.broadcast %130 : vector<1x256xf32> to vector<24x256xf32>
    %132 = arith.mulf %129, %131 : vector<24x256xf32>
    %133 = arith.addf %103, %132 : vector<24x256xf32>
    %cst_57 = arith.constant 0.000000e+00 : f32
    %134 = vector.broadcast %cst_57 : f32 to vector<24x256xf32>
    %135 = vector.extract_strided_slice %56 {offsets = [0, 10], sizes = [24, 1], strides = [1, 1]} : vector<24x25xf32> to vector<24x1xf32>
    %136 = vector.broadcast %135 : vector<24x1xf32> to vector<24x256xf32>
    %137 = arith.mulf %60, %136 : vector<24x256xf32>
    %138 = arith.addf %134, %137 : vector<24x256xf32>
    %139 = vector.extract_strided_slice %56 {offsets = [0, 11], sizes = [24, 1], strides = [1, 1]} : vector<24x25xf32> to vector<24x1xf32>
    %140 = vector.broadcast %139 : vector<24x1xf32> to vector<24x256xf32>
    %141 = arith.mulf %64, %140 : vector<24x256xf32>
    %142 = arith.addf %138, %141 : vector<24x256xf32>
    %143 = vector.extract_strided_slice %56 {offsets = [0, 12], sizes = [24, 1], strides = [1, 1]} : vector<24x25xf32> to vector<24x1xf32>
    %144 = vector.broadcast %143 : vector<24x1xf32> to vector<24x256xf32>
    %145 = arith.mulf %55, %144 : vector<24x256xf32>
    %146 = arith.addf %142, %145 : vector<24x256xf32>
    %147 = vector.extract_strided_slice %56 {offsets = [0, 13], sizes = [24, 1], strides = [1, 1]} : vector<24x25xf32> to vector<24x1xf32>
    %148 = vector.broadcast %147 : vector<24x1xf32> to vector<24x256xf32>
    %149 = arith.mulf %68, %148 : vector<24x256xf32>
    %150 = arith.addf %146, %149 : vector<24x256xf32>
    %151 = vector.extract_strided_slice %56 {offsets = [0, 14], sizes = [24, 1], strides = [1, 1]} : vector<24x25xf32> to vector<24x1xf32>
    %152 = vector.broadcast %151 : vector<24x1xf32> to vector<24x256xf32>
    %153 = arith.mulf %72, %152 : vector<24x256xf32>
    %154 = arith.addf %150, %153 : vector<24x256xf32>
    %155 = arith.addf %133, %154 : vector<24x256xf32>
    %cst_58 = arith.constant 0.000000e+00 : f32
    %156 = vector.broadcast %cst_58 : f32 to vector<24x256xf32>
    %c240_i32_59 = arith.constant 240 : i32
    %157 = tpu.dynamic_rotate %60 by %c240_i32_59 dim 1 : vector<24x256xf32>, i32 -> vector<24x256xf32>
    %158 = vector.extract_strided_slice %56 {offsets = [0, 15], sizes = [24, 1], strides = [1, 1]} : vector<24x25xf32> to vector<24x1xf32>
    %159 = vector.broadcast %158 : vector<24x1xf32> to vector<24x256xf32>
    %160 = arith.mulf %157, %159 : vector<24x256xf32>
    %161 = arith.addf %156, %160 : vector<24x256xf32>
    %c240_i32_60 = arith.constant 240 : i32
    %162 = tpu.dynamic_rotate %64 by %c240_i32_60 dim 1 : vector<24x256xf32>, i32 -> vector<24x256xf32>
    %163 = vector.extract_strided_slice %56 {offsets = [0, 16], sizes = [24, 1], strides = [1, 1]} : vector<24x25xf32> to vector<24x1xf32>
    %164 = vector.broadcast %163 : vector<24x1xf32> to vector<24x256xf32>
    %165 = arith.mulf %162, %164 : vector<24x256xf32>
    %166 = arith.addf %161, %165 : vector<24x256xf32>
    %c240_i32_61 = arith.constant 240 : i32
    %167 = tpu.dynamic_rotate %55 by %c240_i32_61 dim 1 : vector<24x256xf32>, i32 -> vector<24x256xf32>
    %168 = vector.extract_strided_slice %56 {offsets = [0, 17], sizes = [24, 1], strides = [1, 1]} : vector<24x25xf32> to vector<24x1xf32>
    %169 = vector.broadcast %168 : vector<24x1xf32> to vector<24x256xf32>
    %170 = arith.mulf %167, %169 : vector<24x256xf32>
    %171 = arith.addf %166, %170 : vector<24x256xf32>
    %c240_i32_62 = arith.constant 240 : i32
    %172 = tpu.dynamic_rotate %68 by %c240_i32_62 dim 1 : vector<24x256xf32>, i32 -> vector<24x256xf32>
    %173 = vector.extract_strided_slice %56 {offsets = [0, 18], sizes = [24, 1], strides = [1, 1]} : vector<24x25xf32> to vector<24x1xf32>
    %174 = vector.broadcast %173 : vector<24x1xf32> to vector<24x256xf32>
    %175 = arith.mulf %172, %174 : vector<24x256xf32>
    %176 = arith.addf %171, %175 : vector<24x256xf32>
    %c240_i32_63 = arith.constant 240 : i32
    %177 = tpu.dynamic_rotate %72 by %c240_i32_63 dim 1 : vector<24x256xf32>, i32 -> vector<24x256xf32>
    %178 = vector.extract_strided_slice %56 {offsets = [0, 19], sizes = [24, 1], strides = [1, 1]} : vector<24x25xf32> to vector<24x1xf32>
    %179 = vector.broadcast %178 : vector<24x1xf32> to vector<24x256xf32>
    %180 = arith.mulf %177, %179 : vector<24x256xf32>
    %181 = arith.addf %176, %180 : vector<24x256xf32>
    %c3_64 = arith.constant 3 : index
    %c0_65 = arith.constant 0 : index
    %182 = vector.load %arg6[%c3_64, %c0_65] : memref<5x256xf32, #tpu.memory_space<vmem>>, vector<1x256xf32>
    %183 = vector.broadcast %182 : vector<1x256xf32> to vector<24x256xf32>
    %184 = arith.mulf %181, %183 : vector<24x256xf32>
    %185 = arith.addf %155, %184 : vector<24x256xf32>
    %cst_66 = arith.constant 0.000000e+00 : f32
    %186 = vector.broadcast %cst_66 : f32 to vector<24x256xf32>
    %c224_i32 = arith.constant 224 : i32
    %187 = tpu.dynamic_rotate %60 by %c224_i32 dim 1 : vector<24x256xf32>, i32 -> vector<24x256xf32>
    %188 = vector.extract_strided_slice %56 {offsets = [0, 20], sizes = [24, 1], strides = [1, 1]} : vector<24x25xf32> to vector<24x1xf32>
    %189 = vector.broadcast %188 : vector<24x1xf32> to vector<24x256xf32>
    %190 = arith.mulf %187, %189 : vector<24x256xf32>
    %191 = arith.addf %186, %190 : vector<24x256xf32>
    %c224_i32_67 = arith.constant 224 : i32
    %192 = tpu.dynamic_rotate %64 by %c224_i32_67 dim 1 : vector<24x256xf32>, i32 -> vector<24x256xf32>
    %193 = vector.extract_strided_slice %56 {offsets = [0, 21], sizes = [24, 1], strides = [1, 1]} : vector<24x25xf32> to vector<24x1xf32>
    %194 = vector.broadcast %193 : vector<24x1xf32> to vector<24x256xf32>
    %195 = arith.mulf %192, %194 : vector<24x256xf32>
    %196 = arith.addf %191, %195 : vector<24x256xf32>
    %c224_i32_68 = arith.constant 224 : i32
    %197 = tpu.dynamic_rotate %55 by %c224_i32_68 dim 1 : vector<24x256xf32>, i32 -> vector<24x256xf32>
    %198 = vector.extract_strided_slice %56 {offsets = [0, 22], sizes = [24, 1], strides = [1, 1]} : vector<24x25xf32> to vector<24x1xf32>
    %199 = vector.broadcast %198 : vector<24x1xf32> to vector<24x256xf32>
    %200 = arith.mulf %197, %199 : vector<24x256xf32>
    %201 = arith.addf %196, %200 : vector<24x256xf32>
    %c224_i32_69 = arith.constant 224 : i32
    %202 = tpu.dynamic_rotate %68 by %c224_i32_69 dim 1 : vector<24x256xf32>, i32 -> vector<24x256xf32>
    %203 = vector.extract_strided_slice %56 {offsets = [0, 23], sizes = [24, 1], strides = [1, 1]} : vector<24x25xf32> to vector<24x1xf32>
    %204 = vector.broadcast %203 : vector<24x1xf32> to vector<24x256xf32>
    %205 = arith.mulf %202, %204 : vector<24x256xf32>
    %206 = arith.addf %201, %205 : vector<24x256xf32>
    %c224_i32_70 = arith.constant 224 : i32
    %207 = tpu.dynamic_rotate %72 by %c224_i32_70 dim 1 : vector<24x256xf32>, i32 -> vector<24x256xf32>
    %208 = vector.extract_strided_slice %56 {offsets = [0, 24], sizes = [24, 1], strides = [1, 1]} : vector<24x25xf32> to vector<24x1xf32>
    %209 = vector.broadcast %208 : vector<24x1xf32> to vector<24x256xf32>
    %210 = arith.mulf %207, %209 : vector<24x256xf32>
    %211 = arith.addf %206, %210 : vector<24x256xf32>
    %c4_71 = arith.constant 4 : index
    %c0_72 = arith.constant 0 : index
    %212 = vector.load %arg6[%c4_71, %c0_72] : memref<5x256xf32, #tpu.memory_space<vmem>>, vector<1x256xf32>
    %213 = vector.broadcast %212 : vector<1x256xf32> to vector<24x256xf32>
    %214 = arith.mulf %211, %213 : vector<24x256xf32>
    %215 = arith.addf %185, %214 : vector<24x256xf32>
    %cst_73 = arith.constant 0.000000e+00 : f32
    %216 = vector.broadcast %cst_73 : f32 to vector<24x256xf32>
    %217 = arith.cmpf ogt, %215, %216 : vector<24x256xf32>
    %218 = math.exp %215 : vector<24x256xf32>
    %cst_74 = arith.constant 1.000000e+00 : f32
    %219 = vector.broadcast %cst_74 : f32 to vector<24x256xf32>
    %220 = arith.subf %218, %219 : vector<24x256xf32>
    %221 = arith.select %217, %215, %220 : vector<24x256xi1>, vector<24x256xf32>
    %c0_75 = arith.constant 0 : index
    %c0_76 = arith.constant 0 : index
    %c0_77 = arith.constant 0 : index
    %222 = vector.load %arg7[%c0_75, %c0_76, %c0_77] : memref<1x24x256xf32, #tpu.memory_space<vmem>>, vector<1x24x256xf32>
    %223 = vector.shape_cast %222 : vector<1x24x256xf32> to vector<24x256xf32>
    %224 = vector.shape_cast %221 : vector<24x256xf32> to vector<1x24x256xf32>
    tpu.vector_store %arg7[%c0_75, %c0_76, %c0_77], %224 {strides = array<i32>} : memref<1x24x256xf32, #tpu.memory_space<vmem>>, vector<1x24x256xf32>,
    return
  }
  func.func @transform_0(%arg0: i32) -> (i32, i32, i32) {
    %c0_i32 = arith.constant 0 : i32
    %c0_i32_0 = arith.constant 0 : i32
    %c0_i32_1 = arith.constant 0 : i32
    return %arg0, %c0_i32, %c0_i32_0 : i32, i32, i32
  }
  func.func @transform_1(%arg0: i32) -> (i32, i32) {
    %c0_i32 = arith.constant 0 : i32
    %c0_i32_0 = arith.constant 0 : i32
    %c0_i32_1 = arith.constant 0 : i32
    return %c0_i32, %c0_i32_0 : i32, i32
  }
  func.func @transform_2(%arg0: i32) -> (i32, i32) {
    %c0_i32 = arith.constant 0 : i32
    %c0_i32_0 = arith.constant 0 : i32
    %c0_i32_1 = arith.constant 0 : i32
    return %c0_i32, %c0_i32_0 : i32, i32
  }
  func.func @transform_3(%arg0: i32) -> (i32, i32) {
    %c0_i32 = arith.constant 0 : i32
    %c0_i32_0 = arith.constant 0 : i32
    %c0_i32_1 = arith.constant 0 : i32
    return %c0_i32, %c0_i32_0 : i32, i32
  }
  func.func @transform_4(%arg0: i32) -> (i32, i32) {
    %c0_i32 = arith.constant 0 : i32
    %c0_i32_0 = arith.constant 0 : i32
    %c0_i32_1 = arith.constant 0 : i32
    return %c0_i32, %c0_i32_0 : i32, i32
  }
  func.func @transform_5(%arg0: i32) -> (i32, i32) {
    %c0_i32 = arith.constant 0 : i32
    %c0_i32_0 = arith.constant 0 : i32
    %c0_i32_1 = arith.constant 0 : i32
    return %c0_i32, %c0_i32_0 : i32, i32
  }
  func.func @transform_6(%arg0: i32) -> (i32, i32, i32) {
    %c0_i32 = arith.constant 0 : i32
    %c0_i32_0 = arith.constant 0 : i32
    %c0_i32_1 = arith.constant 0 : i32
    return %arg0, %c0_i32, %c0_i32_0 : i32, i32, i32
  }
}

</mosaic_0001>

<llo_original>
// kernel: tpu_custom_call.1
$region0: #{tpu_custom_call.1}
  #allocation0 [shape = 'u32[]', space=smem, size = 0x4, offset = 0x4, fixed_abs, tag = 'smem constant byte address 0x4 - core index']
  #allocation1 [shape = 'u32[144,128]{1,0:T(1,128)}', space=vmem, size = 0x12000, scoped, tag = 'internal scratch']
  #allocation2 [shape = 'f32[72,256]{1,0:T(8,128)}', space=vmem, size = 0x12000, scoped, tag = 'scratch operand']
  %s0 = inlined_call_operand.hbm [shape: f32[2,8,256], index: 0, kind: input, shape index: {}]
  %s1 = inlined_call_operand.hbm [shape: bf16[24,72], index: 1, kind: input, shape index: {}]
  %s2 = inlined_call_operand.hbm [shape: f32[24,25], index: 2, kind: input, shape index: {}]
  %s3 = inlined_call_operand.hbm [shape: f32[9,256], index: 3, kind: input, shape index: {}]
  %s4 = inlined_call_operand.hbm [shape: f32[5,256], index: 4, kind: input, shape index: {}]
  %s5 = inlined_call_operand.hbm [shape: f32[5,256], index: 5, kind: input, shape index: {}]
  %s6 = inlined_call_operand.hbm [shape: f32[2,24,256], index: 6, kind: output, shape index: {}]
  %s7 = sld [smem:[#allocation0]]
  $region81: #{tpu_custom_call.1} parent=0
    _
  %s9 = ssub.s32 1, %s7
  %s10 = scalar_select 0, %s9, %s7
  $region1: #{tpu_custom_call.1} parent=0
    #allocation3 [shape = 'u8[16384]{0}', space=vmem, size = 0x4000, scoped, tag = 'input window, operand 0']
    #allocation4 [shape = 's32[2]{0}', space=sflag, size = 0x8, scoped, tag = 'scoped memory for tpu_custom_call.1']
    #allocation5 [shape = 's32[2]{0}', space=sflag, size = 0x8, scoped, tag = 'scoped memory for tpu_custom_call.1']
    #allocation6 [shape = 'u8[6144]{0}', space=vmem, size = 0x1800, scoped, tag = 'input window, operand 1, single buffered']
    #allocation7 [shape = 's32[1]{0}', space=sflag, size = 0x4, scoped, tag = 'scoped memory for tpu_custom_call.1']
    #allocation8 [shape = 'u8[12288]{0}', space=vmem, size = 0x3000, scoped, tag = 'input window, operand 2, single buffered']
    #allocation9 [shape = 'u8[16384]{0}', space=vmem, size = 0x4000, scoped, tag = 'input window, operand 3, single buffered']
    #allocation10 [shape = 's32[1]{0}', space=sflag, size = 0x4, scoped, tag = 'scoped memory for tpu_custom_call.1']
    #allocation11 [shape = 'u8[8192]{0}', space=vmem, size = 0x2000, scoped, tag = 'input window, operand 4, single buffered']
    #allocation12 [shape = 'u8[8192]{0}', space=vmem, size = 0x2000, scoped, tag = 'input window, operand 5, single buffered']
    #allocation13 [shape = 's32[1]{0}', space=sflag, size = 0x4, scoped, tag = 'scoped memory for tpu_custom_call.1']
    #allocation14 [shape = 'u8[49152]{0}', space=vmem, size = 0xc000, scoped, tag = 'output window, operand 0']
    %11 = vsyncpa [#allocation4], 0
    %s12 = scalar_lea.sflag [#allocation4], 1
    %13 = vsyncpa %s12, 0
    %14 = vsyncpa [#allocation7], 0
    %15 = vsyncpa [#allocation10], 0
    %16 = vsyncpa [#allocation13], 0
    %17 = vsyncpa [#allocation5], 0
    %s18 = scalar_lea.sflag [#allocation5], 1
    %19 = vsyncpa %s18, 0
    loop: start=0, step=1, limit=4
    $region2: #{tpu_custom_call.1} parent=1 // loop_pre_header
      _
    $region3: #{tpu_custom_call.1} parent=1 // loop_header
      %s21 = sphi 0, %s25
      %p22 = scmp.ge.s32.totalorder %s21, 4
      %s31 = sphi 0, %s33
      %s34 = sphi 0, %s31
      %s35 = sphi 0, %s34
      %s51 = sphi 0, %s35
      %s55 = sphi 0, %s55
      %s57 = sphi 0, %s55
      %s58 = sphi 0, %s57
      %s72 = sphi 0, %s58
      %s76 = sphi 0, %s76
      %s78 = sphi 0, %s76
      %s79 = sphi 0, %s78
      %s93 = sphi 0, %s79
      %s97 = sphi 0, %s97
      %s99 = sphi 0, %s97
      %s100 = sphi 0, %s99
      %s114 = sphi 0, %s100
      %s118 = sphi 0, %s118
      %s120 = sphi 0, %s118
      %s121 = sphi 0, %s120
      %s135 = sphi 0, %s121
      %s139 = sphi 0, %s139
      %s141 = sphi 0, %s139
      %s142 = sphi 0, %s141
      %s156 = sphi 0, %s142
      %s162 = sphi 0, %s164
      %s165 = sphi 0, %s162
      %s166 = sphi 0, %s165
      %s182 = sphi 0, %s166
    $region4: #{tpu_custom_call.1} parent=1 // loop_header_branch
      %24 = sbr.rel (%p22) target = $region8
    $region5: #{tpu_custom_call.1} parent=1 // loop_body
      %s26 = ssub.s32 %s21, 1
      %s27 = ssub.s32 %s21, 2
      %s28 = sadd.s32 %s21, 1
      %s29 = ssub.s32 %s21, %s28
      %p30 = scmp.eq.s32.totalorder %s29, 0
      %s32 = sadd.s32 %s31, 1
      %s33 = scalar_select %p30, %s31, %s32
      %p36 = pneg %p30
      %p37 = scmp.eq.s32.totalorder %s21, 1
      %p38 = por %p36, %p37
      %p39 = scmp.ne.s32.totalorder %s31, %s34
      %p40 = scmp.eq.s32.totalorder %s21, 0
      %p41 = por %p39, %p40
      %p42 = scmp.ne.s32.totalorder %s31, %s34
      %p43 = scmp.eq.s32.totalorder %s26, 1
      %p44 = por %p42, %p43
      %p45 = scmp.ne.s32.totalorder %s34, %s35
      %p46 = scmp.eq.s32.totalorder %s26, 0
      %p47 = por %p45, %p46
      %p48 = scmp.ne.s32.totalorder %s34, %s35
      %p49 = scmp.eq.s32.totalorder %s27, 1
      %p50 = por %p48, %p49
      %p52 = scmp.ne.s32.totalorder %s35, %s51
      %p53 = scmp.eq.s32.totalorder %s27, 0
      %p54 = por %p52, %p53
      %s56 = sadd.s32 %s55, 1
      %p59 = scmp.eq.s32.totalorder %s21, 1
      %p60 = scmp.ne.s32.totalorder %s55, %s57
      %p61 = scmp.eq.s32.totalorder %s21, 0
      %p62 = por %p60, %p61
      %p63 = scmp.ne.s32.totalorder %s55, %s57
      %p64 = scmp.eq.s32.totalorder %s26, 1
      %p65 = por %p63, %p64
      %p66 = scmp.ne.s32.totalorder %s57, %s58
      %p67 = scmp.eq.s32.totalorder %s26, 0
      %p68 = por %p66, %p67
      %p69 = scmp.ne.s32.totalorder %s57, %s58
      %p70 = scmp.eq.s32.totalorder %s27, 1
      %p71 = por %p69, %p70
      %p73 = scmp.ne.s32.totalorder %s58, %s72
      %p74 = scmp.eq.s32.totalorder %s27, 0
      %p75 = por %p73, %p74
      %s77 = sadd.s32 %s76, 1
      %p80 = scmp.eq.s32.totalorder %s21, 1
      %p81 = scmp.ne.s32.totalorder %s76, %s78
      %p82 = scmp.eq.s32.totalorder %s21, 0
      %p83 = por %p81, %p82
      %p84 = scmp.ne.s32.totalorder %s76, %s78
      %p85 = scmp.eq.s32.totalorder %s26, 1
      %p86 = por %p84, %p85
      %p87 = scmp.ne.s32.totalorder %s78, %s79
      %p88 = scmp.eq.s32.totalorder %s26, 0
      %p89 = por %p87, %p88
      %p90 = scmp.ne.s32.totalorder %s78, %s79
      %p91 = scmp.eq.s32.totalorder %s27, 1
      %p92 = por %p90, %p91
      %p94 = scmp.ne.s32.totalorder %s79, %s93
      %p95 = scmp.eq.s32.totalorder %s27, 0
      %p96 = por %p94, %p95
      %s98 = sadd.s32 %s97, 1
      %p101 = scmp.eq.s32.totalorder %s21, 1
      %p102 = scmp.ne.s32.totalorder %s97, %s99
      %p103 = scmp.eq.s32.totalorder %s21, 0
      %p104 = por %p102, %p103
      %p105 = scmp.ne.s32.totalorder %s97, %s99
      %p106 = scmp.eq.s32.totalorder %s26, 1
      %p107 = por %p105, %p106
      %p108 = scmp.ne.s32.totalorder %s99, %s100
      %p109 = scmp.eq.s32.totalorder %s26, 0
      %p110 = por %p108, %p109
      %p111 = scmp.ne.s32.totalorder %s99, %s100
      %p112 = scmp.eq.s32.totalorder %s27, 1
      %p113 = por %p111, %p112
      %p115 = scmp.ne.s32.totalorder %s100, %s114
      %p116 = scmp.eq.s32.totalorder %s27, 0
      %p117 = por %p115, %p116
      %s119 = sadd.s32 %s118, 1
      %p122 = scmp.eq.s32.totalorder %s21, 1
      %p123 = scmp.ne.s32.totalorder %s118, %s120
      %p124 = scmp.eq.s32.totalorder %s21, 0
      %p125 = por %p123, %p124
      %p126 = scmp.ne.s32.totalorder %s118, %s120
      %p127 = scmp.eq.s32.totalorder %s26, 1
      %p128 = por %p126, %p127
      %p129 = scmp.ne.s32.totalorder %s120, %s121
      %p130 = scmp.eq.s32.totalorder %s26, 0
      %p131 = por %p129, %p130
      %p132 = scmp.ne.s32.totalorder %s120, %s121
      %p133 = scmp.eq.s32.totalorder %s27, 1
      %p134 = por %p132, %p133
      %p136 = scmp.ne.s32.totalorder %s121, %s135
      %p137 = scmp.eq.s32.totalorder %s27, 0
      %p138 = por %p136, %p137
      %s140 = sadd.s32 %s139, 1
      %p143 = scmp.eq.s32.totalorder %s21, 1
      %p144 = scmp.ne.s32.totalorder %s139, %s141
      %p145 = scmp.eq.s32.totalorder %s21, 0
      %p146 = por %p144, %p145
      %p147 = scmp.ne.s32.totalorder %s139, %s141
      %p148 = scmp.eq.s32.totalorder %s26, 1
      %p149 = por %p147, %p148
      %p150 = scmp.ne.s32.totalorder %s141, %s142
      %p151 = scmp.eq.s32.totalorder %s26, 0
      %p152 = por %p150, %p151
      %p153 = scmp.ne.s32.totalorder %s141, %s142
      %p154 = scmp.eq.s32.totalorder %s27, 1
      %p155 = por %p153, %p154
      %p157 = scmp.ne.s32.totalorder %s142, %s156
      %p158 = scmp.eq.s32.totalorder %s27, 0
      %p159 = por %p157, %p158
      %s160 = ssub.s32 %s21, %s28
      %p161 = scmp.eq.s32.totalorder %s160, 0
      %s163 = sadd.s32 %s162, 1
      %s164 = scalar_select %p161, %s162, %s163
      %p167 = pneg %p161
      %p168 = scmp.eq.s32.totalorder %s21, 1
      %p169 = por %p167, %p168
      %p170 = scmp.ne.s32.totalorder %s162, %s165
      %p171 = scmp.eq.s32.totalorder %s21, 0
      %p172 = por %p170, %p171
      %p173 = scmp.ne.s32.totalorder %s162, %s165
      %p174 = scmp.eq.s32.totalorder %s26, 1
      %p175 = por %p173, %p174
      %p176 = scmp.ne.s32.totalorder %s165, %s166
      %p177 = scmp.eq.s32.totalorder %s26, 0
      %p178 = por %p176, %p177
      %p179 = scmp.ne.s32.totalorder %s165, %s166
      %p180 = scmp.eq.s32.totalorder %s27, 1
      %p181 = por %p179, %p180
      %p183 = scmp.ne.s32.totalorder %s166, %s182
      %p184 = scmp.eq.s32.totalorder %s27, 0
      %p185 = por %p183, %p184
      %p186 = scmp.le.s32.totalorder 1, %s21
      %p187 = scmp.lt.s32.totalorder %s21, 3
      %p188 = pnand %p186, %p187
      %p189 = pneg %p188
      // Predicated region
      $region9: #{tpu_custom_call.1} parent=5 // pred_check
        _
      $region10: #{tpu_custom_call.1} parent=5 // pred_check_branch
        %191 = sbr.rel (%p188) target = $region12
      $region11: #{tpu_custom_call.1} parent=5 // pred_region
        %s192 = ssub.s32 %s21, 1
        // Predicated region
        $region13: #{tpu_custom_call.1} parent=11 // pred_check
          %p193 = pneg %p68
        $region14: #{tpu_custom_call.1} parent=11 // pred_check_branch
          %195 = sbr.rel (%p193) target = $region16
        $region15: #{tpu_custom_call.1} parent=11 // pred_region
          %s197 = ssub.s32 192, 192
          %198 = vsyncadd [#allocation7], %s197
          %s199 = sshll.u32 [#allocation6], 4
          %s200 = int_to_ptr.vmem [resolvable:$true] %s199
          %205 = dma.hbm_to_vmem [thread:$0]  %s1, 192, %s200, [#allocation7], 64, 64, 4
        $region16: #{tpu_custom_call.1} parent=11 // pred_fallthru
          _
        // Predicated region
        $region17: #{tpu_custom_call.1} parent=11 // pred_check
          %p206 = pneg %p89
        $region18: #{tpu_custom_call.1} parent=11 // pred_check_branch
          %208 = sbr.rel (%p206) target = $region20
        $region19: #{tpu_custom_call.1} parent=11 // pred_region
          %s210 = ssub.s32 384, 384
          %211 = vsyncadd [#allocation7], %s210
          %s212 = sshll.u32 [#allocation8], 4
          %s213 = int_to_ptr.vmem [resolvable:$true] %s212
          %218 = dma.hbm_to_vmem [thread:$0]  %s2, 384, %s213, [#allocation7], 128, 128, 8
        $region20: #{tpu_custom_call.1} parent=11 // pred_fallthru
          _
        // Predicated region
        $region21: #{tpu_custom_call.1} parent=11 // pred_check
          %p219 = pneg %p110
        $region22: #{tpu_custom_call.1} parent=11 // pred_check_branch
          %221 = sbr.rel (%p219) target = $region24
        $region23: #{tpu_custom_call.1} parent=11 // pred_region
          %s223 = ssub.s32 512, 512
          %224 = vsyncadd [#allocation10], %s223
          %s225 = sshll.u32 [#allocation9], 4
          %s226 = int_to_ptr.vmem [resolvable:$true] %s225
          %231 = dma.hbm_to_vmem [thread:$0]  %s3, 512, %s226, [#allocation10], 256, 256, 16
        $region24: #{tpu_custom_call.1} parent=11 // pred_fallthru
          _
        // Predicated region
        $region25: #{tpu_custom_call.1} parent=11 // pred_check
          %p232 = pneg %p131
        $region26: #{tpu_custom_call.1} parent=11 // pred_check_branch
          %234 = sbr.rel (%p232) target = $region28
        $region27: #{tpu_custom_call.1} parent=11 // pred_region
          %s236 = ssub.s32 256, 256
          %237 = vsyncadd [#allocation10], %s236
          %s239 = sshll.u32 [#allocation11], 4
          %s240 = int_to_ptr.vmem [resolvable:$true] %s239
          %242 = dma.hbm_to_vmem [thread:$0]  %s4, 256, %s240, [#allocation10]
        $region28: #{tpu_custom_call.1} parent=11 // pred_fallthru
          _
        // Predicated region
        $region29: #{tpu_custom_call.1} parent=11 // pred_check
          %p243 = pneg %p152
        $region30: #{tpu_custom_call.1} parent=11 // pred_check_branch
          %245 = sbr.rel (%p243) target = $region32
        $region31: #{tpu_custom_call.1} parent=11 // pred_region
          %s247 = ssub.s32 256, 256
          %248 = vsyncadd [#allocation13], %s247
          %s250 = sshll.u32 [#allocation12], 4
          %s251 = int_to_ptr.vmem [resolvable:$true] %s250
          %253 = dma.hbm_to_vmem [thread:$0]  %s5, 256, %s251, [#allocation13]
        $region32: #{tpu_custom_call.1} parent=11 // pred_fallthru
          _
      $region12: #{tpu_custom_call.1} parent=5 // pred_fallthru
        _
      %p254 = scmp.lt.s32.totalorder %s21, 2
      // Predicated region
      $region33: #{tpu_custom_call.1} parent=5 // pred_check
        %p255 = pneg %p254
      $region34: #{tpu_custom_call.1} parent=5 // pred_check_branch
        %257 = sbr.rel (%p255) target = $region36
      $region35: #{tpu_custom_call.1} parent=5 // pred_region
        // Predicated region
        $region37: #{tpu_custom_call.1} parent=35 // pred_check
          %p258 = pneg %p41
        $region38: #{tpu_custom_call.1} parent=35 // pred_check_branch
          %260 = sbr.rel (%p258) target = $region40
        $region39: #{tpu_custom_call.1} parent=35 // pred_region
          %s261 = sand.u32 %s31, 1
          %s262 = scalar_lea.sflag [#allocation4], %s261
          %s263 = sand.u32 %s31, 1
          %s264 = smul.addr %s263, 16
          %s265 = scalar_lea.vmem [#allocation3], %s264
          %s267 = ssub.s32 256, 256
          %268 = vsyncadd %s262, %s267
          %s269 = smul.addr %s21, 2
          %s270 = smul.addr %s269, 128
          %s271 = scalar_lea.hbm %s0, %s270
          %s273 = sshll.u32 %s265, 4
          %s274 = int_to_ptr.vmem [resolvable:$true] %s273
          %276 = dma.hbm_to_vmem [thread:$0]  %s271, 256, %s274, %s262
        $region40: #{tpu_custom_call.1} parent=35 // pred_fallthru
          _
      $region36: #{tpu_custom_call.1} parent=5 // pred_fallthru
        _
      %p277 = scmp.le.s32.totalorder 1, %s21
      %p278 = scmp.lt.s32.totalorder %s21, 3
      %p279 = pnand %p277, %p278
      %p280 = pneg %p279
      // Predicated region
      $region41: #{tpu_custom_call.1} parent=5 // pred_check
        _
      $region42: #{tpu_custom_call.1} parent=5 // pred_check_branch
        %282 = sbr.rel (%p279) target = $region44
      $region43: #{tpu_custom_call.1} parent=5 // pred_region
        %s283 = ssub.s32 %s21, 1
        %s284 = sand.u32 %s34, 1
        %s285 = scalar_lea.sflag [#allocation4], %s284
        %s286 = sand.u32 %s34, 1
        %s287 = smul.addr %s286, 16
        %s288 = scalar_lea.vmem [#allocation3], %s287
        // Predicated region
        $region45: #{tpu_custom_call.1} parent=43 // pred_check
          %p289 = pneg %p47
        $region46: #{tpu_custom_call.1} parent=43 // pred_check_branch
          %291 = sbr.rel (%p289) target = $region48
        $region47: #{tpu_custom_call.1} parent=43 // pred_region
          %292 = dma.done %s285, 256
        $region48: #{tpu_custom_call.1} parent=43 // pred_fallthru
          _
        // Predicated region
        $region49: #{tpu_custom_call.1} parent=43 // pred_check
          %p293 = pneg %p68
        $region50: #{tpu_custom_call.1} parent=43 // pred_check_branch
          %295 = sbr.rel (%p293) target = $region52
        $region51: #{tpu_custom_call.1} parent=43 // pred_region
          %296 = dma.done [#allocation7], 192
        $region52: #{tpu_custom_call.1} parent=43 // pred_fallthru
          _
        // Predicated region
        $region53: #{tpu_custom_call.1} parent=43 // pred_check
          %p297 = pneg %p89
        $region54: #{tpu_custom_call.1} parent=43 // pred_check_branch
          %299 = sbr.rel (%p297) target = $region56
        $region55: #{tpu_custom_call.1} parent=43 // pred_region
          %300 = dma.done [#allocation7], 384
        $region56: #{tpu_custom_call.1} parent=43 // pred_fallthru
          _
        // Predicated region
        $region57: #{tpu_custom_call.1} parent=43 // pred_check
          %p301 = pneg %p110
        $region58: #{tpu_custom_call.1} parent=43 // pred_check_branch
          %303 = sbr.rel (%p301) target = $region60
        $region59: #{tpu_custom_call.1} parent=43 // pred_region
          %304 = dma.done [#allocation10], 512
        $region60: #{tpu_custom_call.1} parent=43 // pred_fallthru
          _
        // Predicated region
        $region61: #{tpu_custom_call.1} parent=43 // pred_check
          %p305 = pneg %p131
        $region62: #{tpu_custom_call.1} parent=43 // pred_check_branch
          %307 = sbr.rel (%p305) target = $region64
        $region63: #{tpu_custom_call.1} parent=43 // pred_region
          %308 = dma.done [#allocation10], 256
        $region64: #{tpu_custom_call.1} parent=43 // pred_fallthru
          _
        // Predicated region
        $region65: #{tpu_custom_call.1} parent=43 // pred_check
          %p309 = pneg %p152
        $region66: #{tpu_custom_call.1} parent=43 // pred_check_branch
          %311 = sbr.rel (%p309) target = $region68
        $region67: #{tpu_custom_call.1} parent=43 // pred_region
          %312 = dma.done [#allocation13], 256
        $region68: #{tpu_custom_call.1} parent=43 // pred_fallthru
          _
        %s313 = sand.u32 %s34, 1
        %s314 = scalar_lea.sflag [#allocation4], %s313
        %s315 = sand.u32 %s34, 1
        %s316 = smul.addr %s315, 16
        %s317 = scalar_lea.vmem [#allocation3], %s316
        %p318 = pneg %p47
        %p319 = pneg %p44
        %p320 = pneg %p68
        %p321 = pneg %p65
        %p322 = pneg %p89
        %p323 = pneg %p86
        %p324 = pneg %p110
        %p325 = pneg %p107
        %p326 = pneg %p131
        %p327 = pneg %p128
        %p328 = pneg %p152
        %p329 = pneg %p149
        %p330 = pneg %p178
        %p331 = pneg %p175
        %s332 = sand.u32 %s165, 1
        %s333 = scalar_lea.sflag [#allocation5], %s332
        %s334 = sand.u32 %s165, 1
        %s335 = smul.addr %s334, 48
        %s336 = scalar_lea.vmem [#allocation14], %s335
        %v338 = vld [vmem:[%s288] sm:$0xff]
        %v339 = vld [vmem:[%s288 + $0x8] sm:$0xff]
        %340 = vrot.lane.b32.xlu0 %v338, 17
        %v341 = vpop.permute.xlu0 %340
        %342 = vrot.lane.b32.xlu0 %v339, 17
        %v343 = vpop.permute.xlu0 %342
        %v344 = vlaneseq
        %v345 = vand.u32 %v344, 127
        %vm346 = vcmp.lt.s32.totalorder %v345, 17
        %v347 = vsel %vm346, %v341, %v343
        %v348 = vsel %vm346, %v343, %v341
        %v349 = vld [vmem:[#allocation9] ss:$8 sm:$0x3]
        %v351 = vlaneseq
        %v352 = vshrl.u32 %v351, 7
        %v353 = vsub.s32 0, %v352
        %v354 = vrot.slane %v349, %v353
        %v355 = vlaneseq
        %v356 = vshrl.u32 %v355, 7
        %v357 = vsub.s32 1, %v356
        %v358 = vrot.slane %v349, %v357
        %v361 = vmul.f32 %v348, %v354
        %v362 = vmul.f32 %v347, %v358
        %363 = vst [vmem:[#allocation2] sm:$0xff] %v361
        %364 = vst [vmem:[#allocation2 + $0x8] sm:$0xff] %v362
        %365 = vrot.lane.b32.xlu0 %v338, 16
        %v366 = vpop.permute.xlu0 %365
        %367 = vrot.lane.b32.xlu0 %v339, 16
        %v368 = vpop.permute.xlu0 %367
        %vm369 = vcmp.lt.s32.totalorder %v345, 16
        %v370 = vsel %vm369, %v366, %v368
        %v371 = vsel %vm369, %v368, %v366
        %s372 = scalar_lea.vmem [#allocation9], 1
        %v373 = vld [vmem:[%s372] ss:$8 sm:$0x3]
        %v375 = vlaneseq
        %v376 = vshrl.u32 %v375, 7
        %v377 = vsub.s32 0, %v376
        %v378 = vrot.slane %v373, %v377
        %v379 = vlaneseq
        %v380 = vshrl.u32 %v379, 7
        %v381 = vsub.s32 1, %v380
        %v382 = vrot.slane %v373, %v381
        %v385 = vmul.f32 %v371, %v378
        %v386 = vmul.f32 %v370, %v382
        %387 = vst [vmem:[#allocation2 + $0x10] sm:$0xff] %v385
        %388 = vst [vmem:[#allocation2 + $0x18] sm:$0xff] %v386
        %389 = vrot.lane.b32.xlu0 %v338, 15
        %v390 = vpop.permute.xlu0 %389
        %391 = vrot.lane.b32.xlu0 %v339, 15
        %v392 = vpop.permute.xlu0 %391
        %vm393 = vcmp.lt.s32.totalorder %v345, 15
        %v394 = vsel %vm393, %v390, %v392
        %v395 = vsel %vm393, %v392, %v390
        %s396 = scalar_lea.vmem [#allocation9], 2
        %v397 = vld [vmem:[%s396] ss:$8 sm:$0x3]
        %v399 = vlaneseq
        %v400 = vshrl.u32 %v399, 7
        %v401 = vsub.s32 0, %v400
        %v402 = vrot.slane %v397, %v401
        %v403 = vlaneseq
        %v404 = vshrl.u32 %v403, 7
        %v405 = vsub.s32 1, %v404
        %v406 = vrot.slane %v397, %v405
        %v409 = vmul.f32 %v395, %v402
        %v410 = vmul.f32 %v394, %v406
        %411 = vst [vmem:[#allocation2 + $0x20] sm:$0xff] %v409
        %412 = vst [vmem:[#allocation2 + $0x28] sm:$0xff] %v410
        %413 = vrot.lane.b32.xlu0 %v338, 1
        %v414 = vpop.permute.xlu0 %413
        %415 = vrot.lane.b32.xlu0 %v339, 1
        %v416 = vpop.permute.xlu0 %415
        %vm417 = vcmp.lt.s32.totalorder %v345, 1
        %v418 = vsel %vm417, %v414, %v416
        %v419 = vsel %vm417, %v416, %v414
        %s420 = scalar_lea.vmem [#allocation9], 3
        %v421 = vld [vmem:[%s420] ss:$8 sm:$0x3]
        %v423 = vlaneseq
        %v424 = vshrl.u32 %v423, 7
        %v425 = vsub.s32 0, %v424
        %v426 = vrot.slane %v421, %v425
        %v427 = vlaneseq
        %v428 = vshrl.u32 %v427, 7
        %v429 = vsub.s32 1, %v428
        %v430 = vrot.slane %v421, %v429
        %v433 = vmul.f32 %v419, %v426
        %v434 = vmul.f32 %v418, %v430
        %435 = vst [vmem:[#allocation2 + $0x30] sm:$0xff] %v433
        %436 = vst [vmem:[#allocation2 + $0x38] sm:$0xff] %v434
        %s437 = scalar_lea.vmem [#allocation9], 4
        %v438 = vld [vmem:[%s437] ss:$8 sm:$0x3]
        %v440 = vlaneseq
        %v441 = vshrl.u32 %v440, 7
        %v442 = vsub.s32 0, %v441
        %v443 = vrot.slane %v438, %v442
        %v444 = vlaneseq
        %v445 = vshrl.u32 %v444, 7
        %v446 = vsub.s32 1, %v445
        %v447 = vrot.slane %v438, %v446
        %v450 = vmul.f32 %v338, %v443
        %v451 = vmul.f32 %v339, %v447
        %452 = vst [vmem:[#allocation2 + $0x40] sm:$0xff] %v450
        %453 = vst [vmem:[#allocation2 + $0x48] sm:$0xff] %v451
        %454 = vrot.lane.b32.xlu0 %v338, 127
        %v455 = vpop.permute.xlu0 %454
        %456 = vrot.lane.b32.xlu0 %v339, 127
        %v457 = vpop.permute.xlu0 %456
        %vm458 = vcmp.lt.s32.totalorder %v345, 127
        %v459 = vsel %vm458, %v455, %v457
        %v460 = vsel %vm458, %v457, %v455
        %s461 = scalar_lea.vmem [#allocation9], 5
        %v462 = vld [vmem:[%s461] ss:$8 sm:$0x3]
        %v464 = vlaneseq
        %v465 = vshrl.u32 %v464, 7
        %v466 = vsub.s32 0, %v465
        %v467 = vrot.slane %v462, %v466
        %v468 = vlaneseq
        %v469 = vshrl.u32 %v468, 7
        %v470 = vsub.s32 1, %v469
        %v471 = vrot.slane %v462, %v470
        %v474 = vmul.f32 %v459, %v467
        %v475 = vmul.f32 %v460, %v471
        %476 = vst [vmem:[#allocation2 + $0x50] sm:$0xff] %v474
        %477 = vst [vmem:[#allocation2 + $0x58] sm:$0xff] %v475
        %478 = vrot.lane.b32.xlu0 %v338, 113
        %v479 = vpop.permute.xlu0 %478
        %480 = vrot.lane.b32.xlu0 %v339, 113
        %v481 = vpop.permute.xlu0 %480
        %vm482 = vcmp.lt.s32.totalorder %v345, 113
        %v483 = vsel %vm482, %v479, %v481
        %v484 = vsel %vm482, %v481, %v479
        %s485 = scalar_lea.vmem [#allocation9], 6
        %v486 = vld [vmem:[%s485] ss:$8 sm:$0x3]
        %v488 = vlaneseq
        %v489 = vshrl.u32 %v488, 7
        %v490 = vsub.s32 0, %v489
        %v491 = vrot.slane %v486, %v490
        %v492 = vlaneseq
        %v493 = vshrl.u32 %v492, 7
        %v494 = vsub.s32 1, %v493
        %v495 = vrot.slane %v486, %v494
        %v498 = vmul.f32 %v483, %v491
        %v499 = vmul.f32 %v484, %v495
        %500 = vst [vmem:[#allocation2 + $0x60] sm:$0xff] %v498
        %501 = vst [vmem:[#allocation2 + $0x68] sm:$0xff] %v499
        %502 = vrot.lane.b32.xlu0 %v338, 112
        %v503 = vpop.permute.xlu0 %502
        %504 = vrot.lane.b32.xlu0 %v339, 112
        %v505 = vpop.permute.xlu0 %504
        %vm506 = vcmp.lt.s32.totalorder %v345, 112
        %v507 = vsel %vm506, %v503, %v505
        %v508 = vsel %vm506, %v505, %v503
        %s509 = scalar_lea.vmem [#allocation9], 7
        %v510 = vld [vmem:[%s509] ss:$8 sm:$0x3]
        %v512 = vlaneseq
        %v513 = vshrl.u32 %v512, 7
        %v514 = vsub.s32 0, %v513
        %v515 = vrot.slane %v510, %v514
        %v516 = vlaneseq
        %v517 = vshrl.u32 %v516, 7
        %v518 = vsub.s32 1, %v517
        %v519 = vrot.slane %v510, %v518
        %v522 = vmul.f32 %v507, %v515
        %v523 = vmul.f32 %v508, %v519
        %524 = vst [vmem:[#allocation2 + $0x70] sm:$0xff] %v522
        %525 = vst [vmem:[#allocation2 + $0x78] sm:$0xff] %v523
        %526 = vrot.lane.b32.xlu0 %v338, 111
        %v527 = vpop.permute.xlu0 %526
        %528 = vrot.lane.b32.xlu0 %v339, 111
        %v529 = vpop.permute.xlu0 %528
        %vm530 = vcmp.lt.s32.totalorder %v345, 111
        %v531 = vsel %vm530, %v527, %v529
        %v532 = vsel %vm530, %v529, %v527
        %s533 = scalar_lea.vmem [#allocation9], 16
        %v534 = vld [vmem:[%s533] ss:$8 sm:$0x3]
        %v536 = vlaneseq
        %v537 = vshrl.u32 %v536, 7
        %v538 = vsub.s32 0, %v537
        %v539 = vrot.slane %v534, %v538
        %v540 = vlaneseq
        %v541 = vshrl.u32 %v540, 7
        %v542 = vsub.s32 1, %v541
        %v543 = vrot.slane %v534, %v542
        %v546 = vmul.f32 %v531, %v539
        %v547 = vmul.f32 %v532, %v543
        %548 = vst [vmem:[#allocation2 + $0x80] sm:$0xff] %v546
        %549 = vst [vmem:[#allocation2 + $0x88] sm:$0xff] %v547
        %v550 = vld [vmem:[#allocation6] sm:$0xf]
        %v551 = vld [vmem:[#allocation6 + $0x4] sm:$0xf]
        %v552 = vld [vmem:[#allocation6 + $0x8] sm:$0xf]
        %v553 = vld [vmem:[#allocation2] sm:$0xff]
        %v554 = vld [vmem:[#allocation2 + $0x8] sm:$0xff]
        %v555 = vld [vmem:[#allocation2 + $0x10] sm:$0xff]
        %v556 = vld [vmem:[#allocation2 + $0x18] sm:$0xff]
        %v557 = vld [vmem:[#allocation2 + $0x20] sm:$0xff]
        %v558 = vld [vmem:[#allocation2 + $0x28] sm:$0xff]
        %v559 = vld [vmem:[#allocation2 + $0x30] sm:$0xff]
        %v560 = vld [vmem:[#allocation2 + $0x38] sm:$0xff]
        %v561 = vld [vmem:[#allocation2 + $0x40] sm:$0xff]
        %v562 = vld [vmem:[#allocation2 + $0x48] sm:$0xff]
        %v563 = vld [vmem:[#allocation2 + $0x50] sm:$0xff]
        %v564 = vld [vmem:[#allocation2 + $0x58] sm:$0xff]
        %v565 = vld [vmem:[#allocation2 + $0x60] sm:$0xff]
        %v566 = vld [vmem:[#allocation2 + $0x68] sm:$0xff]
        %v567 = vld [vmem:[#allocation2 + $0x70] sm:$0xff]
        %v568 = vld [vmem:[#allocation2 + $0x78] sm:$0xff]
        %v569 = vld [vmem:[#allocation2 + $0x80] sm:$0xff]
        %v570 = vld [vmem:[#allocation2 + $0x88] sm:$0xff]
        %v571 = vpack.c.bf16 %v555, %v553
        %v572 = vpack.c.bf16 %v556, %v554
        %v573 = vpack.c.bf16 %v559, %v557
        %v574 = vpack.c.bf16 %v560, %v558
        %v575 = vpack.c.bf16 %v563, %v561
        %v576 = vpack.c.bf16 %v564, %v562
        %v577 = vpack.c.bf16 %v567, %v565
        %v578 = vpack.c.bf16 %v568, %v566
        %v579 = vpack.c.bf16 %v569, %v569
        %v580 = vpack.c.bf16 %v570, %v570
        %v584 = vunpack.c.l.b16 %v550
        %v585 = vunpack.c.l.b16 %v551
        %v586 = vunpack.c.l.b16 %v552
        %v587 = vpack.c.b16 %v585, %v584
        %v588 = vpack.c.b16 %v586, %v586
        %vm589 = vcmask 588800
        %v591 = vsel %vm589, %v587, 0
        %v594 = vsel %vm589, %v588, 0
        %vm596 = vcmask 1043456
        %v598 = vsel %vm596, %v579, 0
        %v601 = vsel %vm596, %v580, 0
        %603 = vmatprep.subr.bf16.mxu0 0
        %604 = vmatpush1.bf16.msra.mxu0 0
        %605 = vmatprep.subr.bf16.mxu0 0
        %606 = vmatpush1.bf16.msra.mxu0 0
        %607 = vmatprep.subr.bf16.mxu0 0
        %608 = vmatpush1.bf16.msra.mxu0 0
        %609 = vmatprep.subr.bf16.mxu0 %v601
        %610 = vmatpush1.bf16.msra.mxu0 %v598
        %611 = vmatprep.subr.bf16.mxu0 %v578
        %612 = vmatpush1.bf16.msra.mxu0 %v577
        %613 = vmatprep.subr.bf16.mxu0 %v576
        %614 = vmatpush1.bf16.msra.mxu0 %v575
        %615 = vmatprep.subr.bf16.mxu0 %v574
        %616 = vmatpush1.bf16.msra.mxu0 %v573
        %617 = vmatprep.subr.bf16.mxu0 %v572
        %618 = vmatpush1.bf16.msra.mxu0 %v571
        %619 = vmatprep.subr.bf16.mxu0 0
        %620 = vmatpush2.bf16.msra.mxu0 0
        %621 = vmatprep.subr.bf16.mxu0 0
        %622 = vmatpush2.bf16.msra.mxu0 0
        %623 = vmatprep.subr.bf16.mxu0 0
        %624 = vmatpush2.bf16.msra.mxu0 0
        %625 = vmatprep.subr.bf16.mxu0 0
        %626 = vmatpush2.bf16.msra.mxu0 0
        %627 = vmatprep.subr.bf16.mxu0 0
        %628 = vmatpush2.bf16.msra.mxu0 0
        %629 = vmatprep.subr.bf16.mxu0 0
        %630 = vmatpush2.bf16.msra.mxu0 0
        %631 = vmatprep.subr.bf16.mxu0 0
        %632 = vmatpush2.bf16.msra.mxu0 0
        %633 = vmatprep.subr.bf16.mxu0 0
        %634 = vmatpush2.bf16.msra.mxu0 0
        %635 = vmatprep.mubr.bf16.mxu0 0
        %636 = vmatmul.mubr.bf16.gmra.mxu0 %v591
        %v637 = vpop.f32.mrf.mxu0
        %v638 = vadd.f32 0.0, %v637
        %v639 = vpop.f32.mrf.mxu0
        %v640 = vadd.f32 0.0, %v639
        %v641 = vpop.f32.mrf.mxu0
        %v642 = vadd.f32 0.0, %v641
        %v643 = vpop.f32.mrf.mxu0
        %v644 = vadd.f32 0.0, %v643
        %645 = vmatprep.mubr.bf16.mxu0 0
        %646 = vmatmul.mubr.bf16.gmra.mxu0 %v594
        %v647 = vpop.f32.mrf.mxu0
        %v648 = vadd.f32 0.0, %v647
        %v649 = vpop.f32.mrf.mxu0
        %v650 = vadd.f32 0.0, %v649
        %v651 = vpop.f32.mrf.mxu0
        %v652 = vpop.f32.mrf.mxu0
        %653 = vdwg.mxu0
        %vm654 = vcmp.gt.f32.partialorder %v638, 0.0
        %vm655 = vcmp.gt.f32.partialorder %v640, 0.0
        %vm656 = vcmp.gt.f32.partialorder %v642, 0.0
        %vm657 = vcmp.gt.f32.partialorder %v644, 0.0
        %vm658 = vcmp.gt.f32.partialorder %v648, 0.0
        %vm659 = vcmp.gt.f32.partialorder %v650, 0.0
        %v660 = vmul.f32 %v638, 1.442695
        %v661 = vpow.pop %v660
        %v662 = vmul.f32 %v640, 1.442695
        %v663 = vpow.pop %v662
        %v664 = vmul.f32 %v642, 1.442695
        %v665 = vpow.pop %v664
        %v666 = vmul.f32 %v644, 1.442695
        %v667 = vpow.pop %v666
        %v668 = vmul.f32 %v648, 1.442695
        %v669 = vpow.pop %v668
        %v670 = vmul.f32 %v650, 1.442695
        %v671 = vpow.pop %v670
        %v672 = vsub.f32 %v661, 1.0
        %v673 = vsub.f32 %v663, 1.0
        %v674 = vsub.f32 %v665, 1.0
        %v675 = vsub.f32 %v667, 1.0
        %v676 = vsub.f32 %v669, 1.0
        %v677 = vsub.f32 %v671, 1.0
        %v678 = vsel %vm654, %v638, %v672
        %v679 = vsel %vm655, %v640, %v673
        %v680 = vsel %vm656, %v642, %v674
        %v681 = vsel %vm657, %v644, %v675
        %v682 = vsel %vm658, %v648, %v676
        %v683 = vsel %vm659, %v650, %v677
        %v684 = vld [vmem:[#allocation8] sm:$0xff]
        %v685 = vld [vmem:[#allocation8 + $0x8] sm:$0xff]
        %v686 = vld [vmem:[#allocation8 + $0x10] sm:$0xff]
        %687 = vrot.lane.b32.xlu0 %v678, 2
        %v688 = vpop.permute.xlu0 %687
        %689 = vrot.lane.b32.xlu0 %v680, 2
        %v690 = vpop.permute.xlu0 %689
        %691 = vrot.lane.b32.xlu0 %v682, 2
        %v692 = vpop.permute.xlu0 %691
        %693 = vrot.lane.b32.xlu0 %v679, 2
        %v694 = vpop.permute.xlu0 %693
        %695 = vrot.lane.b32.xlu0 %v681, 2
        %v696 = vpop.permute.xlu0 %695
        %697 = vrot.lane.b32.xlu0 %v683, 2
        %v698 = vpop.permute.xlu0 %697
        %vm699 = vcmp.lt.s32.totalorder %v345, 2
        %v700 = vsel %vm699, %v688, %v694
        %v701 = vsel %vm699, %v690, %v696
        %v702 = vsel %vm699, %v692, %v698
        %v703 = vsel %vm699, %v694, %v688
        %v704 = vsel %vm699, %v696, %v690
        %v705 = vsel %vm699, %v698, %v692
        %v706 = vld [vmem:[#allocation11] ss:$8 sm:$0x3]
        %v708 = vlaneseq
        %v709 = vshrl.u32 %v708, 7
        %v710 = vsub.s32 0, %v709
        %v711 = vrot.slane %v706, %v710
        %v712 = vlaneseq
        %v713 = vshrl.u32 %v712, 7
        %v714 = vsub.s32 1, %v713
        %v715 = vrot.slane %v706, %v714
        %v718 = vmul.f32 %v703, %v711
        %v719 = vmul.f32 %v700, %v715
        %v720 = vmul.f32 %v704, %v711
        %v721 = vmul.f32 %v701, %v715
        %v722 = vmul.f32 %v705, %v711
        %v723 = vmul.f32 %v702, %v715
        %724 = vrot.lane.b32.xlu0 %v678, 1
        %v725 = vpop.permute.xlu0 %724
        %726 = vrot.lane.b32.xlu0 %v680, 1
        %v727 = vpop.permute.xlu0 %726
        %728 = vrot.lane.b32.xlu0 %v682, 1
        %v729 = vpop.permute.xlu0 %728
        %730 = vrot.lane.b32.xlu0 %v679, 1
        %v731 = vpop.permute.xlu0 %730
        %732 = vrot.lane.b32.xlu0 %v681, 1
        %v733 = vpop.permute.xlu0 %732
        %734 = vrot.lane.b32.xlu0 %v683, 1
        %v735 = vpop.permute.xlu0 %734
        %v736 = vsel %vm417, %v725, %v731
        %v737 = vsel %vm417, %v727, %v733
        %v738 = vsel %vm417, %v729, %v735
        %v739 = vsel %vm417, %v731, %v725
        %v740 = vsel %vm417, %v733, %v727
        %v741 = vsel %vm417, %v735, %v729
        %s742 = scalar_lea.vmem [#allocation11], 1
        %v743 = vld [vmem:[%s742] ss:$8 sm:$0x3]
        %v745 = vlaneseq
        %v746 = vshrl.u32 %v745, 7
        %v747 = vsub.s32 0, %v746
        %v748 = vrot.slane %v743, %v747
        %v749 = vlaneseq
        %v750 = vshrl.u32 %v749, 7
        %v751 = vsub.s32 1, %v750
        %v752 = vrot.slane %v743, %v751
        %v755 = vmul.f32 %v739, %v748
        %v756 = vmul.f32 %v736, %v752
        %v757 = vmul.f32 %v740, %v748
        %v758 = vmul.f32 %v737, %v752
        %v759 = vmul.f32 %v741, %v748
        %v760 = vmul.f32 %v738, %v752
        %761 = vrot.lane.b32.xlu0 %v678, 127
        %v762 = vpop.permute.xlu0 %761
        %763 = vrot.lane.b32.xlu0 %v680, 127
        %v764 = vpop.permute.xlu0 %763
        %765 = vrot.lane.b32.xlu0 %v682, 127
        %v766 = vpop.permute.xlu0 %765
        %767 = vrot.lane.b32.xlu0 %v679, 127
        %v768 = vpop.permute.xlu0 %767
        %769 = vrot.lane.b32.xlu0 %v681, 127
        %v770 = vpop.permute.xlu0 %769
        %771 = vrot.lane.b32.xlu0 %v683, 127
        %v772 = vpop.permute.xlu0 %771
        %v773 = vsel %vm458, %v762, %v768
        %v774 = vsel %vm458, %v764, %v770
        %v775 = vsel %vm458, %v766, %v772
        %v776 = vsel %vm458, %v768, %v762
        %v777 = vsel %vm458, %v770, %v764
        %v778 = vsel %vm458, %v772, %v766
        %s779 = scalar_lea.vmem [#allocation11], 3
        %v780 = vld [vmem:[%s779] ss:$8 sm:$0x3]
        %v782 = vlaneseq
        %v783 = vshrl.u32 %v782, 7
        %v784 = vsub.s32 0, %v783
        %v785 = vrot.slane %v780, %v784
        %v786 = vlaneseq
        %v787 = vshrl.u32 %v786, 7
        %v788 = vsub.s32 1, %v787
        %v789 = vrot.slane %v780, %v788
        %v792 = vmul.f32 %v773, %v785
        %v793 = vmul.f32 %v776, %v789
        %v794 = vmul.f32 %v774, %v785
        %v795 = vmul.f32 %v777, %v789
        %v796 = vmul.f32 %v775, %v785
        %v797 = vmul.f32 %v778, %v789
        %798 = vrot.lane.b32.xlu0 %v678, 126
        %v799 = vpop.permute.xlu0 %798
        %800 = vrot.lane.b32.xlu0 %v680, 126
        %v801 = vpop.permute.xlu0 %800
        %802 = vrot.lane.b32.xlu0 %v682, 126
        %v803 = vpop.permute.xlu0 %802
        %804 = vrot.lane.b32.xlu0 %v679, 126
        %v805 = vpop.permute.xlu0 %804
        %806 = vrot.lane.b32.xlu0 %v681, 126
        %v807 = vpop.permute.xlu0 %806
        %808 = vrot.lane.b32.xlu0 %v683, 126
        %v809 = vpop.permute.xlu0 %808
        %vm810 = vcmp.lt.s32.totalorder %v345, 126
        %v811 = vsel %vm810, %v799, %v805
        %v812 = vsel %vm810, %v801, %v807
        %v813 = vsel %vm810, %v803, %v809
        %v814 = vsel %vm810, %v805, %v799
        %v815 = vsel %vm810, %v807, %v801
        %v816 = vsel %vm810, %v809, %v803
        %s817 = scalar_lea.vmem [#allocation11], 4
        %v818 = vld [vmem:[%s817] ss:$8 sm:$0x3]
        %v820 = vlaneseq
        %v821 = vshrl.u32 %v820, 7
        %v822 = vsub.s32 0, %v821
        %v823 = vrot.slane %v818, %v822
        %v824 = vlaneseq
        %v825 = vshrl.u32 %v824, 7
        %v826 = vsub.s32 1, %v825
        %v827 = vrot.slane %v818, %v826
        %v830 = vmul.f32 %v811, %v823
        %v831 = vmul.f32 %v814, %v827
        %v832 = vmul.f32 %v812, %v823
        %v833 = vmul.f32 %v815, %v827
        %v834 = vmul.f32 %v813, %v823
        %v835 = vmul.f32 %v816, %v827
        %836 = vrot.lane.b32.xlu0 %v718, 32
        %v837 = vpop.permute.xlu0 %836
        %838 = vrot.lane.b32.xlu0 %v720, 32
        %v839 = vpop.permute.xlu0 %838
        %840 = vrot.lane.b32.xlu0 %v722, 32
        %v841 = vpop.permute.xlu0 %840
        %842 = vrot.lane.b32.xlu0 %v719, 32
        %v843 = vpop.permute.xlu0 %842
        %844 = vrot.lane.b32.xlu0 %v721, 32
        %v845 = vpop.permute.xlu0 %844
        %846 = vrot.lane.b32.xlu0 %v723, 32
        %v847 = vpop.permute.xlu0 %846
        %vm848 = vcmp.lt.s32.totalorder %v345, 32
        %v849 = vsel %vm848, %v837, %v843
        %v850 = vsel %vm848, %v839, %v845
        %v851 = vsel %vm848, %v841, %v847
        %v852 = vsel %vm848, %v843, %v837
        %v853 = vsel %vm848, %v845, %v839
        %v854 = vsel %vm848, %v847, %v841
        %856 = vset.pattern.permute.xlu0 0
        %857 = vperm.xlu0 %856, %v684
        %v858 = vpop.permute.xlu0 %857
        %861 = vset.pattern.permute.xlu0 0
        %862 = vperm.xlu0 %861, %v685
        %v863 = vpop.permute.xlu0 %862
        %866 = vset.pattern.permute.xlu0 0
        %867 = vperm.xlu0 %866, %v686
        %v868 = vpop.permute.xlu0 %867
        %v870 = vmul.f32 %v852, %v858
        %v871 = vmul.f32 %v849, %v858
        %v872 = vmul.f32 %v853, %v863
        %v873 = vmul.f32 %v850, %v863
        %v874 = vmul.f32 %v854, %v868
        %v875 = vmul.f32 %v851, %v868
        %v876 = vadd.f32 %v870, 0.0
        %v877 = vadd.f32 %v871, 0.0
        %v878 = vadd.f32 %v872, 0.0
        %v879 = vadd.f32 %v873, 0.0
        %v880 = vadd.f32 %v874, 0.0
        %v881 = vadd.f32 %v875, 0.0
        %882 = vrot.lane.b32.xlu0 %v755, 32
        %v883 = vpop.permute.xlu0 %882
        %884 = vrot.lane.b32.xlu0 %v757, 32
        %v885 = vpop.permute.xlu0 %884
        %886 = vrot.lane.b32.xlu0 %v759, 32
        %v887 = vpop.permute.xlu0 %886
        %888 = vrot.lane.b32.xlu0 %v756, 32
        %v889 = vpop.permute.xlu0 %888
        %890 = vrot.lane.b32.xlu0 %v758, 32
        %v891 = vpop.permute.xlu0 %890
        %892 = vrot.lane.b32.xlu0 %v760, 32
        %v893 = vpop.permute.xlu0 %892
        %v894 = vsel %vm848, %v883, %v889
        %v895 = vsel %vm848, %v885, %v891
        %v896 = vsel %vm848, %v887, %v893
        %v897 = vsel %vm848, %v889, %v883
        %v898 = vsel %vm848, %v891, %v885
        %v899 = vsel %vm848, %v893, %v887
        %900 = vset.pattern.permute.xlu0 1
        %901 = vperm.xlu0 %900, %v684
        %v902 = vpop.permute.xlu0 %901
        %904 = vset.pattern.permute.xlu0 1
        %905 = vperm.xlu0 %904, %v685
        %v906 = vpop.permute.xlu0 %905
        %908 = vset.pattern.permute.xlu0 1
        %909 = vperm.xlu0 %908, %v686
        %v910 = vpop.permute.xlu0 %909
        %v912 = vmul.f32 %v897, %v902
        %v913 = vmul.f32 %v894, %v902
        %v914 = vmul.f32 %v898, %v906
        %v915 = vmul.f32 %v895, %v906
        %v916 = vmul.f32 %v899, %v910
        %v917 = vmul.f32 %v896, %v910
        %v918 = vadd.f32 %v876, %v912
        %v919 = vadd.f32 %v877, %v913
        %v920 = vadd.f32 %v878, %v914
        %v921 = vadd.f32 %v879, %v915
        %v922 = vadd.f32 %v880, %v916
        %v923 = vadd.f32 %v881, %v917
        %924 = vrot.lane.b32.xlu0 %v678, 32
        %v925 = vpop.permute.xlu0 %924
        %926 = vrot.lane.b32.xlu0 %v680, 32
        %v927 = vpop.permute.xlu0 %926
        %928 = vrot.lane.b32.xlu0 %v682, 32
        %v929 = vpop.permute.xlu0 %928
        %930 = vrot.lane.b32.xlu0 %v679, 32
        %v931 = vpop.permute.xlu0 %930
        %932 = vrot.lane.b32.xlu0 %v681, 32
        %v933 = vpop.permute.xlu0 %932
        %934 = vrot.lane.b32.xlu0 %v683, 32
        %v935 = vpop.permute.xlu0 %934
        %v936 = vsel %vm848, %v925, %v931
        %v937 = vsel %vm848, %v927, %v933
        %v938 = vsel %vm848, %v929, %v935
        %v939 = vsel %vm848, %v931, %v925
        %v940 = vsel %vm848, %v933, %v927
        %v941 = vsel %vm848, %v935, %v929
        %942 = vset.pattern.permute.xlu0 2
        %943 = vperm.xlu0 %942, %v684
        %v944 = vpop.permute.xlu0 %943
        %946 = vset.pattern.permute.xlu0 2
        %947 = vperm.xlu0 %946, %v685
        %v948 = vpop.permute.xlu0 %947
        %950 = vset.pattern.permute.xlu0 2
        %951 = vperm.xlu0 %950, %v686
        %v952 = vpop.permute.xlu0 %951
        %v954 = vmul.f32 %v939, %v944
        %v955 = vmul.f32 %v936, %v944
        %v956 = vmul.f32 %v940, %v948
        %v957 = vmul.f32 %v937, %v948
        %v958 = vmul.f32 %v941, %v952
        %v959 = vmul.f32 %v938, %v952
        %v960 = vadd.f32 %v918, %v954
        %v961 = vadd.f32 %v919, %v955
        %v962 = vadd.f32 %v920, %v956
        %v963 = vadd.f32 %v921, %v957
        %v964 = vadd.f32 %v922, %v958
        %v965 = vadd.f32 %v923, %v959
        %966 = vrot.lane.b32.xlu0 %v792, 32
        %v967 = vpop.permute.xlu0 %966
        %968 = vrot.lane.b32.xlu0 %v794, 32
        %v969 = vpop.permute.xlu0 %968
        %970 = vrot.lane.b32.xlu0 %v796, 32
        %v971 = vpop.permute.xlu0 %970
        %972 = vrot.lane.b32.xlu0 %v793, 32
        %v973 = vpop.permute.xlu0 %972
        %974 = vrot.lane.b32.xlu0 %v795, 32
        %v975 = vpop.permute.xlu0 %974
        %976 = vrot.lane.b32.xlu0 %v797, 32
        %v977 = vpop.permute.xlu0 %976
        %v978 = vsel %vm848, %v967, %v973
        %v979 = vsel %vm848, %v969, %v975
        %v980 = vsel %vm848, %v971, %v977
        %v981 = vsel %vm848, %v973, %v967
        %v982 = vsel %vm848, %v975, %v969
        %v983 = vsel %vm848, %v977, %v971
        %984 = vset.pattern.permute.xlu0 3
        %985 = vperm.xlu0 %984, %v684
        %v986 = vpop.permute.xlu0 %985
        %988 = vset.pattern.permute.xlu0 3
        %989 = vperm.xlu0 %988, %v685
        %v990 = vpop.permute.xlu0 %989
        %992 = vset.pattern.permute.xlu0 3
        %993 = vperm.xlu0 %992, %v686
        %v994 = vpop.permute.xlu0 %993
        %v996 = vmul.f32 %v981, %v986
        %v997 = vmul.f32 %v978, %v986
        %v998 = vmul.f32 %v982, %v990
        %v999 = vmul.f32 %v979, %v990
        %v1000 = vmul.f32 %v983, %v994
        %v1001 = vmul.f32 %v980, %v994
        %v1002 = vadd.f32 %v960, %v996
        %v1003 = vadd.f32 %v961, %v997
        %v1004 = vadd.f32 %v962, %v998
        %v1005 = vadd.f32 %v963, %v999
        %v1006 = vadd.f32 %v964, %v1000
        %v1007 = vadd.f32 %v965, %v1001
        %1008 = vrot.lane.b32.xlu0 %v830, 32
        %v1009 = vpop.permute.xlu0 %1008
        %1010 = vrot.lane.b32.xlu0 %v832, 32
        %v1011 = vpop.permute.xlu0 %1010
        %1012 = vrot.lane.b32.xlu0 %v834, 32
        %v1013 = vpop.permute.xlu0 %1012
        %1014 = vrot.lane.b32.xlu0 %v831, 32
        %v1015 = vpop.permute.xlu0 %1014
        %1016 = vrot.lane.b32.xlu0 %v833, 32
        %v1017 = vpop.permute.xlu0 %1016
        %1018 = vrot.lane.b32.xlu0 %v835, 32
        %v1019 = vpop.permute.xlu0 %1018
        %v1020 = vsel %vm848, %v1009, %v1015
        %v1021 = vsel %vm848, %v1011, %v1017
        %v1022 = vsel %vm848, %v1013, %v1019
        %v1023 = vsel %vm848, %v1015, %v1009
        %v1024 = vsel %vm848, %v1017, %v1011
        %v1025 = vsel %vm848, %v1019, %v1013
        %1026 = vset.pattern.permute.xlu0 4
        %1027 = vperm.xlu0 %1026, %v684
        %v1028 = vpop.permute.xlu0 %1027
        %1030 = vset.pattern.permute.xlu0 4
        %1031 = vperm.xlu0 %1030, %v685
        %v1032 = vpop.permute.xlu0 %1031
        %1034 = vset.pattern.permute.xlu0 4
        %1035 = vperm.xlu0 %1034, %v686
        %v1036 = vpop.permute.xlu0 %1035
        %v1038 = vmul.f32 %v1023, %v1028
        %v1039 = vmul.f32 %v1020, %v1028
        %v1040 = vmul.f32 %v1024, %v1032
        %v1041 = vmul.f32 %v1021, %v1032
        %v1042 = vmul.f32 %v1025, %v1036
        %v1043 = vmul.f32 %v1022, %v1036
        %v1044 = vadd.f32 %v1002, %v1038
        %v1045 = vadd.f32 %v1003, %v1039
        %v1046 = vadd.f32 %v1004, %v1040
        %v1047 = vadd.f32 %v1005, %v1041
        %v1048 = vadd.f32 %v1006, %v1042
        %v1049 = vadd.f32 %v1007, %v1043
        %v1050 = vld [vmem:[#allocation12] ss:$8 sm:$0x3]
        %v1052 = vlaneseq
        %v1053 = vshrl.u32 %v1052, 7
        %v1054 = vsub.s32 0, %v1053
        %v1055 = vrot.slane %v1050, %v1054
        %v1056 = vlaneseq
        %v1057 = vshrl.u32 %v1056, 7
        %v1058 = vsub.s32 1, %v1057
        %v1059 = vrot.slane %v1050, %v1058
        %v1062 = vmul.f32 %v1044, %v1055
        %v1063 = vmul.f32 %v1045, %v1059
        %v1064 = vmul.f32 %v1046, %v1055
        %v1065 = vmul.f32 %v1047, %v1059
        %v1066 = vmul.f32 %v1048, %v1055
        %v1067 = vmul.f32 %v1049, %v1059
        %v1068 = vadd.f32 %v1062, 0.0
        %v1069 = vadd.f32 %v1063, 0.0
        %v1070 = vadd.f32 %v1064, 0.0
        %v1071 = vadd.f32 %v1065, 0.0
        %v1072 = vadd.f32 %v1066, 0.0
        %v1073 = vadd.f32 %v1067, 0.0
        %1074 = vrot.lane.b32.xlu0 %v718, 16
        %v1075 = vpop.permute.xlu0 %1074
        %1076 = vrot.lane.b32.xlu0 %v720, 16
        %v1077 = vpop.permute.xlu0 %1076
        %1078 = vrot.lane.b32.xlu0 %v722, 16
        %v1079 = vpop.permute.xlu0 %1078
        %1080 = vrot.lane.b32.xlu0 %v719, 16
        %v1081 = vpop.permute.xlu0 %1080
        %1082 = vrot.lane.b32.xlu0 %v721, 16
        %v1083 = vpop.permute.xlu0 %1082
        %1084 = vrot.lane.b32.xlu0 %v723, 16
        %v1085 = vpop.permute.xlu0 %1084
        %v1086 = vsel %vm369, %v1075, %v1081
        %v1087 = vsel %vm369, %v1077, %v1083
        %v1088 = vsel %vm369, %v1079, %v1085
        %v1089 = vsel %vm369, %v1081, %v1075
        %v1090 = vsel %vm369, %v1083, %v1077
        %v1091 = vsel %vm369, %v1085, %v1079
        %1092 = vset.pattern.permute.xlu0 5
        %1093 = vperm.xlu0 %1092, %v684
        %v1094 = vpop.permute.xlu0 %1093
        %1096 = vset.pattern.permute.xlu0 5
        %1097 = vperm.xlu0 %1096, %v685
        %v1098 = vpop.permute.xlu0 %1097
        %1100 = vset.pattern.permute.xlu0 5
        %1101 = vperm.xlu0 %1100, %v686
        %v1102 = vpop.permute.xlu0 %1101
        %v1104 = vmul.f32 %v1089, %v1094
        %v1105 = vmul.f32 %v1086, %v1094
        %v1106 = vmul.f32 %v1090, %v1098
        %v1107 = vmul.f32 %v1087, %v1098
        %v1108 = vmul.f32 %v1091, %v1102
        %v1109 = vmul.f32 %v1088, %v1102
        %v1110 = vadd.f32 %v1104, 0.0
        %v1111 = vadd.f32 %v1105, 0.0
        %v1112 = vadd.f32 %v1106, 0.0
        %v1113 = vadd.f32 %v1107, 0.0
        %v1114 = vadd.f32 %v1108, 0.0
        %v1115 = vadd.f32 %v1109, 0.0
        %1116 = vrot.lane.b32.xlu0 %v755, 16
        %v1117 = vpop.permute.xlu0 %1116
        %1118 = vrot.lane.b32.xlu0 %v757, 16
        %v1119 = vpop.permute.xlu0 %1118
        %1120 = vrot.lane.b32.xlu0 %v759, 16
        %v1121 = vpop.permute.xlu0 %1120
        %1122 = vrot.lane.b32.xlu0 %v756, 16
        %v1123 = vpop.permute.xlu0 %1122
        %1124 = vrot.lane.b32.xlu0 %v758, 16
        %v1125 = vpop.permute.xlu0 %1124
        %1126 = vrot.lane.b32.xlu0 %v760, 16
        %v1127 = vpop.permute.xlu0 %1126
        %v1128 = vsel %vm369, %v1117, %v1123
        %v1129 = vsel %vm369, %v1119, %v1125
        %v1130 = vsel %vm369, %v1121, %v1127
        %v1131 = vsel %vm369, %v1123, %v1117
        %v1132 = vsel %vm369, %v1125, %v1119
        %v1133 = vsel %vm369, %v1127, %v1121
        %1134 = vset.pattern.permute.xlu0 6
        %1135 = vperm.xlu0 %1134, %v684
        %v1136 = vpop.permute.xlu0 %1135
        %1138 = vset.pattern.permute.xlu0 6
        %1139 = vperm.xlu0 %1138, %v685
        %v1140 = vpop.permute.xlu0 %1139
        %1142 = vset.pattern.permute.xlu0 6
        %1143 = vperm.xlu0 %1142, %v686
        %v1144 = vpop.permute.xlu0 %1143
        %v1146 = vmul.f32 %v1131, %v1136
        %v1147 = vmul.f32 %v1128, %v1136
        %v1148 = vmul.f32 %v1132, %v1140
        %v1149 = vmul.f32 %v1129, %v1140
        %v1150 = vmul.f32 %v1133, %v1144
        %v1151 = vmul.f32 %v1130, %v1144
        %v1152 = vadd.f32 %v1110, %v1146
        %v1153 = vadd.f32 %v1111, %v1147
        %v1154 = vadd.f32 %v1112, %v1148
        %v1155 = vadd.f32 %v1113, %v1149
        %v1156 = vadd.f32 %v1114, %v1150
        %v1157 = vadd.f32 %v1115, %v1151
        %1158 = vrot.lane.b32.xlu0 %v678, 16
        %v1159 = vpop.permute.xlu0 %1158
        %1160 = vrot.lane.b32.xlu0 %v680, 16
        %v1161 = vpop.permute.xlu0 %1160
        %1162 = vrot.lane.b32.xlu0 %v682, 16
        %v1163 = vpop.permute.xlu0 %1162
        %1164 = vrot.lane.b32.xlu0 %v679, 16
        %v1165 = vpop.permute.xlu0 %1164
        %1166 = vrot.lane.b32.xlu0 %v681, 16
        %v1167 = vpop.permute.xlu0 %1166
        %1168 = vrot.lane.b32.xlu0 %v683, 16
        %v1169 = vpop.permute.xlu0 %1168
        %v1170 = vsel %vm369, %v1159, %v1165
        %v1171 = vsel %vm369, %v1161, %v1167
        %v1172 = vsel %vm369, %v1163, %v1169
        %v1173 = vsel %vm369, %v1165, %v1159
        %v1174 = vsel %vm369, %v1167, %v1161
        %v1175 = vsel %vm369, %v1169, %v1163
        %1176 = vset.pattern.permute.xlu0 7
        %1177 = vperm.xlu0 %1176, %v684
        %v1178 = vpop.permute.xlu0 %1177
        %1180 = vset.pattern.permute.xlu0 7
        %1181 = vperm.xlu0 %1180, %v685
        %v1182 = vpop.permute.xlu0 %1181
        %1184 = vset.pattern.permute.xlu0 7
        %1185 = vperm.xlu0 %1184, %v686
        %v1186 = vpop.permute.xlu0 %1185
        %v1188 = vmul.f32 %v1173, %v1178
        %v1189 = vmul.f32 %v1170, %v1178
        %v1190 = vmul.f32 %v1174, %v1182
        %v1191 = vmul.f32 %v1171, %v1182
        %v1192 = vmul.f32 %v1175, %v1186
        %v1193 = vmul.f32 %v1172, %v1186
        %v1194 = vadd.f32 %v1152, %v1188
        %v1195 = vadd.f32 %v1153, %v1189
        %v1196 = vadd.f32 %v1154, %v1190
        %v1197 = vadd.f32 %v1155, %v1191
        %v1198 = vadd.f32 %v1156, %v1192
        %v1199 = vadd.f32 %v1157, %v1193
        %1200 = vrot.lane.b32.xlu0 %v792, 16
        %v1201 = vpop.permute.xlu0 %1200
        %1202 = vrot.lane.b32.xlu0 %v794, 16
        %v1203 = vpop.permute.xlu0 %1202
        %1204 = vrot.lane.b32.xlu0 %v796, 16
        %v1205 = vpop.permute.xlu0 %1204
        %1206 = vrot.lane.b32.xlu0 %v793, 16
        %v1207 = vpop.permute.xlu0 %1206
        %1208 = vrot.lane.b32.xlu0 %v795, 16
        %v1209 = vpop.permute.xlu0 %1208
        %1210 = vrot.lane.b32.xlu0 %v797, 16
        %v1211 = vpop.permute.xlu0 %1210
        %v1212 = vsel %vm369, %v1201, %v1207
        %v1213 = vsel %vm369, %v1203, %v1209
        %v1214 = vsel %vm369, %v1205, %v1211
        %v1215 = vsel %vm369, %v1207, %v1201
        %v1216 = vsel %vm369, %v1209, %v1203
        %v1217 = vsel %vm369, %v1211, %v1205
        %1218 = vset.pattern.permute.xlu0 8
        %1219 = vperm.xlu0 %1218, %v684
        %v1220 = vpop.permute.xlu0 %1219
        %1222 = vset.pattern.permute.xlu0 8
        %1223 = vperm.xlu0 %1222, %v685
        %v1224 = vpop.permute.xlu0 %1223
        %1226 = vset.pattern.permute.xlu0 8
        %1227 = vperm.xlu0 %1226, %v686
        %v1228 = vpop.permute.xlu0 %1227
        %v1230 = vmul.f32 %v1215, %v1220
        %v1231 = vmul.f32 %v1212, %v1220
        %v1232 = vmul.f32 %v1216, %v1224
        %v1233 = vmul.f32 %v1213, %v1224
        %v1234 = vmul.f32 %v1217, %v1228
        %v1235 = vmul.f32 %v1214, %v1228
        %v1236 = vadd.f32 %v1194, %v1230
        %v1237 = vadd.f32 %v1195, %v1231
        %v1238 = vadd.f32 %v1196, %v1232
        %v1239 = vadd.f32 %v1197, %v1233
        %v1240 = vadd.f32 %v1198, %v1234
        %v1241 = vadd.f32 %v1199, %v1235
        %1242 = vrot.lane.b32.xlu0 %v830, 16
        %v1243 = vpop.permute.xlu0 %1242
        %1244 = vrot.lane.b32.xlu0 %v832, 16
        %v1245 = vpop.permute.xlu0 %1244
        %1246 = vrot.lane.b32.xlu0 %v834, 16
        %v1247 = vpop.permute.xlu0 %1246
        %1248 = vrot.lane.b32.xlu0 %v831, 16
        %v1249 = vpop.permute.xlu0 %1248
        %1250 = vrot.lane.b32.xlu0 %v833, 16
        %v1251 = vpop.permute.xlu0 %1250
        %1252 = vrot.lane.b32.xlu0 %v835, 16
        %v1253 = vpop.permute.xlu0 %1252
        %v1254 = vsel %vm369, %v1243, %v1249
        %v1255 = vsel %vm369, %v1245, %v1251
        %v1256 = vsel %vm369, %v1247, %v1253
        %v1257 = vsel %vm369, %v1249, %v1243
        %v1258 = vsel %vm369, %v1251, %v1245
        %v1259 = vsel %vm369, %v1253, %v1247
        %1260 = vset.pattern.permute.xlu0 9
        %1261 = vperm.xlu0 %1260, %v684
        %v1262 = vpop.permute.xlu0 %1261
        %1264 = vset.pattern.permute.xlu0 9
        %1265 = vperm.xlu0 %1264, %v685
        %v1266 = vpop.permute.xlu0 %1265
        %1268 = vset.pattern.permute.xlu0 9
        %1269 = vperm.xlu0 %1268, %v686
        %v1270 = vpop.permute.xlu0 %1269
        %v1272 = vmul.f32 %v1257, %v1262
        %v1273 = vmul.f32 %v1254, %v1262
        %v1274 = vmul.f32 %v1258, %v1266
        %v1275 = vmul.f32 %v1255, %v1266
        %v1276 = vmul.f32 %v1259, %v1270
        %v1277 = vmul.f32 %v1256, %v1270
        %v1278 = vadd.f32 %v1236, %v1272
        %v1279 = vadd.f32 %v1237, %v1273
        %v1280 = vadd.f32 %v1238, %v1274
        %v1281 = vadd.f32 %v1239, %v1275
        %v1282 = vadd.f32 %v1240, %v1276
        %v1283 = vadd.f32 %v1241, %v1277
        %s1284 = scalar_lea.vmem [#allocation12], 1
        %v1285 = vld [vmem:[%s1284] ss:$8 sm:$0x3]
        %v1287 = vlaneseq
        %v1288 = vshrl.u32 %v1287, 7
        %v1289 = vsub.s32 0, %v1288
        %v1290 = vrot.slane %v1285, %v1289
        %v1291 = vlaneseq
        %v1292 = vshrl.u32 %v1291, 7
        %v1293 = vsub.s32 1, %v1292
        %v1294 = vrot.slane %v1285, %v1293
        %v1297 = vmul.f32 %v1278, %v1290
        %v1298 = vmul.f32 %v1279, %v1294
        %v1299 = vmul.f32 %v1280, %v1290
        %v1300 = vmul.f32 %v1281, %v1294
        %v1301 = vmul.f32 %v1282, %v1290
        %v1302 = vmul.f32 %v1283, %v1294
        %v1303 = vadd.f32 %v1068, %v1297
        %v1304 = vadd.f32 %v1069, %v1298
        %v1305 = vadd.f32 %v1070, %v1299
        %v1306 = vadd.f32 %v1071, %v1300
        %v1307 = vadd.f32 %v1072, %v1301
        %v1308 = vadd.f32 %v1073, %v1302
        %1309 = vset.pattern.permute.xlu0 10
        %1310 = vperm.xlu0 %1309, %v684
        %v1311 = vpop.permute.xlu0 %1310
        %1313 = vset.pattern.permute.xlu0 10
        %1314 = vperm.xlu0 %1313, %v685
        %v1315 = vpop.permute.xlu0 %1314
        %1317 = vset.pattern.permute.xlu0 10
        %1318 = vperm.xlu0 %1317, %v686
        %v1319 = vpop.permute.xlu0 %1318
        %v1321 = vmul.f32 %v718, %v1311
        %v1322 = vmul.f32 %v719, %v1311
        %v1323 = vmul.f32 %v720, %v1315
        %v1324 = vmul.f32 %v721, %v1315
        %v1325 = vmul.f32 %v722, %v1319
        %v1326 = vmul.f32 %v723, %v1319
        %v1327 = vadd.f32 %v1321, 0.0
        %v1328 = vadd.f32 %v1322, 0.0
        %v1329 = vadd.f32 %v1323, 0.0
        %v1330 = vadd.f32 %v1324, 0.0
        %v1331 = vadd.f32 %v1325, 0.0
        %v1332 = vadd.f32 %v1326, 0.0
        %1333 = vset.pattern.permute.xlu0 11
        %1334 = vperm.xlu0 %1333, %v684
        %v1335 = vpop.permute.xlu0 %1334
        %1337 = vset.pattern.permute.xlu0 11
        %1338 = vperm.xlu0 %1337, %v685
        %v1339 = vpop.permute.xlu0 %1338
        %1341 = vset.pattern.permute.xlu0 11
        %1342 = vperm.xlu0 %1341, %v686
        %v1343 = vpop.permute.xlu0 %1342
        %v1345 = vmul.f32 %v755, %v1335
        %v1346 = vmul.f32 %v756, %v1335
        %v1347 = vmul.f32 %v757, %v1339
        %v1348 = vmul.f32 %v758, %v1339
        %v1349 = vmul.f32 %v759, %v1343
        %v1350 = vmul.f32 %v760, %v1343
        %v1351 = vadd.f32 %v1327, %v1345
        %v1352 = vadd.f32 %v1328, %v1346
        %v1353 = vadd.f32 %v1329, %v1347
        %v1354 = vadd.f32 %v1330, %v1348
        %v1355 = vadd.f32 %v1331, %v1349
        %v1356 = vadd.f32 %v1332, %v1350
        %1357 = vset.pattern.permute.xlu0 12
        %1358 = vperm.xlu0 %1357, %v684
        %v1359 = vpop.permute.xlu0 %1358
        %1361 = vset.pattern.permute.xlu0 12
        %1362 = vperm.xlu0 %1361, %v685
        %v1363 = vpop.permute.xlu0 %1362
        %1365 = vset.pattern.permute.xlu0 12
        %1366 = vperm.xlu0 %1365, %v686
        %v1367 = vpop.permute.xlu0 %1366
        %v1369 = vmul.f32 %v678, %v1359
        %v1370 = vmul.f32 %v679, %v1359
        %v1371 = vmul.f32 %v680, %v1363
        %v1372 = vmul.f32 %v681, %v1363
        %v1373 = vmul.f32 %v682, %v1367
        %v1374 = vmul.f32 %v683, %v1367
        %v1375 = vadd.f32 %v1351, %v1369
        %v1376 = vadd.f32 %v1352, %v1370
        %v1377 = vadd.f32 %v1353, %v1371
        %v1378 = vadd.f32 %v1354, %v1372
        %v1379 = vadd.f32 %v1355, %v1373
        %v1380 = vadd.f32 %v1356, %v1374
        %1381 = vset.pattern.permute.xlu0 13
        %1382 = vperm.xlu0 %1381, %v684
        %v1383 = vpop.permute.xlu0 %1382
        %1385 = vset.pattern.permute.xlu0 13
        %1386 = vperm.xlu0 %1385, %v685
        %v1387 = vpop.permute.xlu0 %1386
        %1389 = vset.pattern.permute.xlu0 13
        %1390 = vperm.xlu0 %1389, %v686
        %v1391 = vpop.permute.xlu0 %1390
        %v1393 = vmul.f32 %v792, %v1383
        %v1394 = vmul.f32 %v793, %v1383
        %v1395 = vmul.f32 %v794, %v1387
        %v1396 = vmul.f32 %v795, %v1387
        %v1397 = vmul.f32 %v796, %v1391
        %v1398 = vmul.f32 %v797, %v1391
        %v1399 = vadd.f32 %v1375, %v1393
        %v1400 = vadd.f32 %v1376, %v1394
        %v1401 = vadd.f32 %v1377, %v1395
        %v1402 = vadd.f32 %v1378, %v1396
        %v1403 = vadd.f32 %v1379, %v1397
        %v1404 = vadd.f32 %v1380, %v1398
        %1405 = vset.pattern.permute.xlu0 14
        %1406 = vperm.xlu0 %1405, %v684
        %v1407 = vpop.permute.xlu0 %1406
        %1409 = vset.pattern.permute.xlu0 14
        %1410 = vperm.xlu0 %1409, %v685
        %v1411 = vpop.permute.xlu0 %1410
        %1413 = vset.pattern.permute.xlu0 14
        %1414 = vperm.xlu0 %1413, %v686
        %v1415 = vpop.permute.xlu0 %1414
        %v1417 = vmul.f32 %v830, %v1407
        %v1418 = vmul.f32 %v831, %v1407
        %v1419 = vmul.f32 %v832, %v1411
        %v1420 = vmul.f32 %v833, %v1411
        %v1421 = vmul.f32 %v834, %v1415
        %v1422 = vmul.f32 %v835, %v1415
        %v1423 = vadd.f32 %v1399, %v1417
        %v1424 = vadd.f32 %v1400, %v1418
        %v1425 = vadd.f32 %v1401, %v1419
        %v1426 = vadd.f32 %v1402, %v1420
        %v1427 = vadd.f32 %v1403, %v1421
        %v1428 = vadd.f32 %v1404, %v1422
        %v1429 = vadd.f32 %v1303, %v1423
        %v1430 = vadd.f32 %v1304, %v1424
        %v1431 = vadd.f32 %v1305, %v1425
        %v1432 = vadd.f32 %v1306, %v1426
        %v1433 = vadd.f32 %v1307, %v1427
        %v1434 = vadd.f32 %v1308, %v1428
        %1435 = vrot.lane.b32.xlu0 %v718, 112
        %v1436 = vpop.permute.xlu0 %1435
        %1437 = vrot.lane.b32.xlu0 %v720, 112
        %v1438 = vpop.permute.xlu0 %1437
        %1439 = vrot.lane.b32.xlu0 %v722, 112
        %v1440 = vpop.permute.xlu0 %1439
        %1441 = vrot.lane.b32.xlu0 %v719, 112
        %v1442 = vpop.permute.xlu0 %1441
        %1443 = vrot.lane.b32.xlu0 %v721, 112
        %v1444 = vpop.permute.xlu0 %1443
        %1445 = vrot.lane.b32.xlu0 %v723, 112
        %v1446 = vpop.permute.xlu0 %1445
        %v1447 = vsel %vm506, %v1436, %v1442
        %v1448 = vsel %vm506, %v1438, %v1444
        %v1449 = vsel %vm506, %v1440, %v1446
        %v1450 = vsel %vm506, %v1442, %v1436
        %v1451 = vsel %vm506, %v1444, %v1438
        %v1452 = vsel %vm506, %v1446, %v1440
        %1453 = vset.pattern.permute.xlu0 15
        %1454 = vperm.xlu0 %1453, %v684
        %v1455 = vpop.permute.xlu0 %1454
        %1457 = vset.pattern.permute.xlu0 15
        %1458 = vperm.xlu0 %1457, %v685
        %v1459 = vpop.permute.xlu0 %1458
        %1461 = vset.pattern.permute.xlu0 15
        %1462 = vperm.xlu0 %1461, %v686
        %v1463 = vpop.permute.xlu0 %1462
        %v1465 = vmul.f32 %v1447, %v1455
        %v1466 = vmul.f32 %v1450, %v1455
        %v1467 = vmul.f32 %v1448, %v1459
        %v1468 = vmul.f32 %v1451, %v1459
        %v1469 = vmul.f32 %v1449, %v1463
        %v1470 = vmul.f32 %v1452, %v1463
        %v1471 = vadd.f32 %v1465, 0.0
        %v1472 = vadd.f32 %v1466, 0.0
        %v1473 = vadd.f32 %v1467, 0.0
        %v1474 = vadd.f32 %v1468, 0.0
        %v1475 = vadd.f32 %v1469, 0.0
        %v1476 = vadd.f32 %v1470, 0.0
        %1477 = vrot.lane.b32.xlu0 %v755, 112
        %v1478 = vpop.permute.xlu0 %1477
        %1479 = vrot.lane.b32.xlu0 %v757, 112
        %v1480 = vpop.permute.xlu0 %1479
        %1481 = vrot.lane.b32.xlu0 %v759, 112
        %v1482 = vpop.permute.xlu0 %1481
        %1483 = vrot.lane.b32.xlu0 %v756, 112
        %v1484 = vpop.permute.xlu0 %1483
        %1485 = vrot.lane.b32.xlu0 %v758, 112
        %v1486 = vpop.permute.xlu0 %1485
        %1487 = vrot.lane.b32.xlu0 %v760, 112
        %v1488 = vpop.permute.xlu0 %1487
        %v1489 = vsel %vm506, %v1478, %v1484
        %v1490 = vsel %vm506, %v1480, %v1486
        %v1491 = vsel %vm506, %v1482, %v1488
        %v1492 = vsel %vm506, %v1484, %v1478
        %v1493 = vsel %vm506, %v1486, %v1480
        %v1494 = vsel %vm506, %v1488, %v1482
        %1495 = vset.pattern.permute.xlu0 16
        %1496 = vperm.xlu0 %1495, %v684
        %v1497 = vpop.permute.xlu0 %1496
        %1499 = vset.pattern.permute.xlu0 16
        %1500 = vperm.xlu0 %1499, %v685
        %v1501 = vpop.permute.xlu0 %1500
        %1503 = vset.pattern.permute.xlu0 16
        %1504 = vperm.xlu0 %1503, %v686
        %v1505 = vpop.permute.xlu0 %1504
        %v1507 = vmul.f32 %v1489, %v1497
        %v1508 = vmul.f32 %v1492, %v1497
        %v1509 = vmul.f32 %v1490, %v1501
        %v1510 = vmul.f32 %v1493, %v1501
        %v1511 = vmul.f32 %v1491, %v1505
        %v1512 = vmul.f32 %v1494, %v1505
        %v1513 = vadd.f32 %v1471, %v1507
        %v1514 = vadd.f32 %v1472, %v1508
        %v1515 = vadd.f32 %v1473, %v1509
        %v1516 = vadd.f32 %v1474, %v1510
        %v1517 = vadd.f32 %v1475, %v1511
        %v1518 = vadd.f32 %v1476, %v1512
        %1519 = vrot.lane.b32.xlu0 %v678, 112
        %v1520 = vpop.permute.xlu0 %1519
        %1521 = vrot.lane.b32.xlu0 %v680, 112
        %v1522 = vpop.permute.xlu0 %1521
        %1523 = vrot.lane.b32.xlu0 %v682, 112
        %v1524 = vpop.permute.xlu0 %1523
        %1525 = vrot.lane.b32.xlu0 %v679, 112
        %v1526 = vpop.permute.xlu0 %1525
        %1527 = vrot.lane.b32.xlu0 %v681, 112
        %v1528 = vpop.permute.xlu0 %1527
        %1529 = vrot.lane.b32.xlu0 %v683, 112
        %v1530 = vpop.permute.xlu0 %1529
        %v1531 = vsel %vm506, %v1520, %v1526
        %v1532 = vsel %vm506, %v1522, %v1528
        %v1533 = vsel %vm506, %v1524, %v1530
        %v1534 = vsel %vm506, %v1526, %v1520
        %v1535 = vsel %vm506, %v1528, %v1522
        %v1536 = vsel %vm506, %v1530, %v1524
        %1537 = vset.pattern.permute.xlu0 17
        %1538 = vperm.xlu0 %1537, %v684
        %v1539 = vpop.permute.xlu0 %1538
        %1541 = vset.pattern.permute.xlu0 17
        %1542 = vperm.xlu0 %1541, %v685
        %v1543 = vpop.permute.xlu0 %1542
        %1545 = vset.pattern.permute.xlu0 17
        %1546 = vperm.xlu0 %1545, %v686
        %v1547 = vpop.permute.xlu0 %1546
        %v1549 = vmul.f32 %v1531, %v1539
        %v1550 = vmul.f32 %v1534, %v1539
        %v1551 = vmul.f32 %v1532, %v1543
        %v1552 = vmul.f32 %v1535, %v1543
        %v1553 = vmul.f32 %v1533, %v1547
        %v1554 = vmul.f32 %v1536, %v1547
        %v1555 = vadd.f32 %v1513, %v1549
        %v1556 = vadd.f32 %v1514, %v1550
        %v1557 = vadd.f32 %v1515, %v1551
        %v1558 = vadd.f32 %v1516, %v1552
        %v1559 = vadd.f32 %v1517, %v1553
        %v1560 = vadd.f32 %v1518, %v1554
        %1561 = vrot.lane.b32.xlu0 %v792, 112
        %v1562 = vpop.permute.xlu0 %1561
        %1563 = vrot.lane.b32.xlu0 %v794, 112
        %v1564 = vpop.permute.xlu0 %1563
        %1565 = vrot.lane.b32.xlu0 %v796, 112
        %v1566 = vpop.permute.xlu0 %1565
        %1567 = vrot.lane.b32.xlu0 %v793, 112
        %v1568 = vpop.permute.xlu0 %1567
        %1569 = vrot.lane.b32.xlu0 %v795, 112
        %v1570 = vpop.permute.xlu0 %1569
        %1571 = vrot.lane.b32.xlu0 %v797, 112
        %v1572 = vpop.permute.xlu0 %1571
        %v1573 = vsel %vm506, %v1562, %v1568
        %v1574 = vsel %vm506, %v1564, %v1570
        %v1575 = vsel %vm506, %v1566, %v1572
        %v1576 = vsel %vm506, %v1568, %v1562
        %v1577 = vsel %vm506, %v1570, %v1564
        %v1578 = vsel %vm506, %v1572, %v1566
        %1579 = vset.pattern.permute.xlu0 18
        %1580 = vperm.xlu0 %1579, %v684
        %v1581 = vpop.permute.xlu0 %1580
        %1583 = vset.pattern.permute.xlu0 18
        %1584 = vperm.xlu0 %1583, %v685
        %v1585 = vpop.permute.xlu0 %1584
        %1587 = vset.pattern.permute.xlu0 18
        %1588 = vperm.xlu0 %1587, %v686
        %v1589 = vpop.permute.xlu0 %1588
        %v1591 = vmul.f32 %v1573, %v1581
        %v1592 = vmul.f32 %v1576, %v1581
        %v1593 = vmul.f32 %v1574, %v1585
        %v1594 = vmul.f32 %v1577, %v1585
        %v1595 = vmul.f32 %v1575, %v1589
        %v1596 = vmul.f32 %v1578, %v1589
        %v1597 = vadd.f32 %v1555, %v1591
        %v1598 = vadd.f32 %v1556, %v1592
        %v1599 = vadd.f32 %v1557, %v1593
        %v1600 = vadd.f32 %v1558, %v1594
        %v1601 = vadd.f32 %v1559, %v1595
        %v1602 = vadd.f32 %v1560, %v1596
        %1603 = vrot.lane.b32.xlu0 %v830, 112
        %v1604 = vpop.permute.xlu0 %1603
        %1605 = vrot.lane.b32.xlu0 %v832, 112
        %v1606 = vpop.permute.xlu0 %1605
        %1607 = vrot.lane.b32.xlu0 %v834, 112
        %v1608 = vpop.permute.xlu0 %1607
        %1609 = vrot.lane.b32.xlu0 %v831, 112
        %v1610 = vpop.permute.xlu0 %1609
        %1611 = vrot.lane.b32.xlu0 %v833, 112
        %v1612 = vpop.permute.xlu0 %1611
        %1613 = vrot.lane.b32.xlu0 %v835, 112
        %v1614 = vpop.permute.xlu0 %1613
        %v1615 = vsel %vm506, %v1604, %v1610
        %v1616 = vsel %vm506, %v1606, %v1612
        %v1617 = vsel %vm506, %v1608, %v1614
        %v1618 = vsel %vm506, %v1610, %v1604
        %v1619 = vsel %vm506, %v1612, %v1606
        %v1620 = vsel %vm506, %v1614, %v1608
        %1621 = vset.pattern.permute.xlu0 19
        %1622 = vperm.xlu0 %1621, %v684
        %v1623 = vpop.permute.xlu0 %1622
        %1625 = vset.pattern.permute.xlu0 19
        %1626 = vperm.xlu0 %1625, %v685
        %v1627 = vpop.permute.xlu0 %1626
        %1629 = vset.pattern.permute.xlu0 19
        %1630 = vperm.xlu0 %1629, %v686
        %v1631 = vpop.permute.xlu0 %1630
        %v1633 = vmul.f32 %v1615, %v1623
        %v1634 = vmul.f32 %v1618, %v1623
        %v1635 = vmul.f32 %v1616, %v1627
        %v1636 = vmul.f32 %v1619, %v1627
        %v1637 = vmul.f32 %v1617, %v1631
        %v1638 = vmul.f32 %v1620, %v1631
        %v1639 = vadd.f32 %v1597, %v1633
        %v1640 = vadd.f32 %v1598, %v1634
        %v1641 = vadd.f32 %v1599, %v1635
        %v1642 = vadd.f32 %v1600, %v1636
        %v1643 = vadd.f32 %v1601, %v1637
        %v1644 = vadd.f32 %v1602, %v1638
        %s1645 = scalar_lea.vmem [#allocation12], 3
        %v1646 = vld [vmem:[%s1645] ss:$8 sm:$0x3]
        %v1648 = vlaneseq
        %v1649 = vshrl.u32 %v1648, 7
        %v1650 = vsub.s32 0, %v1649
        %v1651 = vrot.slane %v1646, %v1650
        %v1652 = vlaneseq
        %v1653 = vshrl.u32 %v1652, 7
        %v1654 = vsub.s32 1, %v1653
        %v1655 = vrot.slane %v1646, %v1654
        %v1658 = vmul.f32 %v1639, %v1651
        %v1659 = vmul.f32 %v1640, %v1655
        %v1660 = vmul.f32 %v1641, %v1651
        %v1661 = vmul.f32 %v1642, %v1655
        %v1662 = vmul.f32 %v1643, %v1651
        %v1663 = vmul.f32 %v1644, %v1655
        %v1664 = vadd.f32 %v1429, %v1658
        %v1665 = vadd.f32 %v1430, %v1659
        %v1666 = vadd.f32 %v1431, %v1660
        %v1667 = vadd.f32 %v1432, %v1661
        %v1668 = vadd.f32 %v1433, %v1662
        %v1669 = vadd.f32 %v1434, %v1663
        %1670 = vrot.lane.b32.xlu0 %v718, 96
        %v1671 = vpop.permute.xlu0 %1670
        %1672 = vrot.lane.b32.xlu0 %v720, 96
        %v1673 = vpop.permute.xlu0 %1672
        %1674 = vrot.lane.b32.xlu0 %v722, 96
        %v1675 = vpop.permute.xlu0 %1674
        %1676 = vrot.lane.b32.xlu0 %v719, 96
        %v1677 = vpop.permute.xlu0 %1676
        %1678 = vrot.lane.b32.xlu0 %v721, 96
        %v1679 = vpop.permute.xlu0 %1678
        %1680 = vrot.lane.b32.xlu0 %v723, 96
        %v1681 = vpop.permute.xlu0 %1680
        %vm1682 = vcmp.lt.s32.totalorder %v345, 96
        %v1683 = vsel %vm1682, %v1671, %v1677
        %v1684 = vsel %vm1682, %v1673, %v1679
        %v1685 = vsel %vm1682, %v1675, %v1681
        %v1686 = vsel %vm1682, %v1677, %v1671
        %v1687 = vsel %vm1682, %v1679, %v1673
        %v1688 = vsel %vm1682, %v1681, %v1675
        %1689 = vset.pattern.permute.xlu0 20
        %1690 = vperm.xlu0 %1689, %v684
        %v1691 = vpop.permute.xlu0 %1690
        %1693 = vset.pattern.permute.xlu0 20
        %1694 = vperm.xlu0 %1693, %v685
        %v1695 = vpop.permute.xlu0 %1694
        %1697 = vset.pattern.permute.xlu0 20
        %1698 = vperm.xlu0 %1697, %v686
        %v1699 = vpop.permute.xlu0 %1698
        %v1701 = vmul.f32 %v1683, %v1691
        %v1702 = vmul.f32 %v1686, %v1691
        %v1703 = vmul.f32 %v1684, %v1695
        %v1704 = vmul.f32 %v1687, %v1695
        %v1705 = vmul.f32 %v1685, %v1699
        %v1706 = vmul.f32 %v1688, %v1699
        %v1707 = vadd.f32 %v1701, 0.0
        %v1708 = vadd.f32 %v1702, 0.0
        %v1709 = vadd.f32 %v1703, 0.0
        %v1710 = vadd.f32 %v1704, 0.0
        %v1711 = vadd.f32 %v1705, 0.0
        %v1712 = vadd.f32 %v1706, 0.0
        %1713 = vrot.lane.b32.xlu0 %v755, 96
        %v1714 = vpop.permute.xlu0 %1713
        %1715 = vrot.lane.b32.xlu0 %v757, 96
        %v1716 = vpop.permute.xlu0 %1715
        %1717 = vrot.lane.b32.xlu0 %v759, 96
        %v1718 = vpop.permute.xlu0 %1717
        %1719 = vrot.lane.b32.xlu0 %v756, 96
        %v1720 = vpop.permute.xlu0 %1719
        %1721 = vrot.lane.b32.xlu0 %v758, 96
        %v1722 = vpop.permute.xlu0 %1721
        %1723 = vrot.lane.b32.xlu0 %v760, 96
        %v1724 = vpop.permute.xlu0 %1723
        %v1725 = vsel %vm1682, %v1714, %v1720
        %v1726 = vsel %vm1682, %v1716, %v1722
        %v1727 = vsel %vm1682, %v1718, %v1724
        %v1728 = vsel %vm1682, %v1720, %v1714
        %v1729 = vsel %vm1682, %v1722, %v1716
        %v1730 = vsel %vm1682, %v1724, %v1718
        %1731 = vset.pattern.permute.xlu0 21
        %1732 = vperm.xlu0 %1731, %v684
        %v1733 = vpop.permute.xlu0 %1732
        %1735 = vset.pattern.permute.xlu0 21
        %1736 = vperm.xlu0 %1735, %v685
        %v1737 = vpop.permute.xlu0 %1736
        %1739 = vset.pattern.permute.xlu0 21
        %1740 = vperm.xlu0 %1739, %v686
        %v1741 = vpop.permute.xlu0 %1740
        %v1743 = vmul.f32 %v1725, %v1733
        %v1744 = vmul.f32 %v1728, %v1733
        %v1745 = vmul.f32 %v1726, %v1737
        %v1746 = vmul.f32 %v1729, %v1737
        %v1747 = vmul.f32 %v1727, %v1741
        %v1748 = vmul.f32 %v1730, %v1741
        %v1749 = vadd.f32 %v1707, %v1743
        %v1750 = vadd.f32 %v1708, %v1744
        %v1751 = vadd.f32 %v1709, %v1745
        %v1752 = vadd.f32 %v1710, %v1746
        %v1753 = vadd.f32 %v1711, %v1747
        %v1754 = vadd.f32 %v1712, %v1748
        %1755 = vrot.lane.b32.xlu0 %v678, 96
        %v1756 = vpop.permute.xlu0 %1755
        %1757 = vrot.lane.b32.xlu0 %v680, 96
        %v1758 = vpop.permute.xlu0 %1757
        %1759 = vrot.lane.b32.xlu0 %v682, 96
        %v1760 = vpop.permute.xlu0 %1759
        %1761 = vrot.lane.b32.xlu0 %v679, 96
        %v1762 = vpop.permute.xlu0 %1761
        %1763 = vrot.lane.b32.xlu0 %v681, 96
        %v1764 = vpop.permute.xlu0 %1763
        %1765 = vrot.lane.b32.xlu0 %v683, 96
        %v1766 = vpop.permute.xlu0 %1765
        %v1767 = vsel %vm1682, %v1756, %v1762
        %v1768 = vsel %vm1682, %v1758, %v1764
        %v1769 = vsel %vm1682, %v1760, %v1766
        %v1770 = vsel %vm1682, %v1762, %v1756
        %v1771 = vsel %vm1682, %v1764, %v1758
        %v1772 = vsel %vm1682, %v1766, %v1760
        %1773 = vset.pattern.permute.xlu0 22
        %1774 = vperm.xlu0 %1773, %v684
        %v1775 = vpop.permute.xlu0 %1774
        %1777 = vset.pattern.permute.xlu0 22
        %1778 = vperm.xlu0 %1777, %v685
        %v1779 = vpop.permute.xlu0 %1778
        %1781 = vset.pattern.permute.xlu0 22
        %1782 = vperm.xlu0 %1781, %v686
        %v1783 = vpop.permute.xlu0 %1782
        %v1785 = vmul.f32 %v1767, %v1775
        %v1786 = vmul.f32 %v1770, %v1775
        %v1787 = vmul.f32 %v1768, %v1779
        %v1788 = vmul.f32 %v1771, %v1779
        %v1789 = vmul.f32 %v1769, %v1783
        %v1790 = vmul.f32 %v1772, %v1783
        %v1791 = vadd.f32 %v1749, %v1785
        %v1792 = vadd.f32 %v1750, %v1786
        %v1793 = vadd.f32 %v1751, %v1787
        %v1794 = vadd.f32 %v1752, %v1788
        %v1795 = vadd.f32 %v1753, %v1789
        %v1796 = vadd.f32 %v1754, %v1790
        %1797 = vrot.lane.b32.xlu0 %v792, 96
        %v1798 = vpop.permute.xlu0 %1797
        %1799 = vrot.lane.b32.xlu0 %v794, 96
        %v1800 = vpop.permute.xlu0 %1799
        %1801 = vrot.lane.b32.xlu0 %v796, 96
        %v1802 = vpop.permute.xlu0 %1801
        %1803 = vrot.lane.b32.xlu0 %v793, 96
        %v1804 = vpop.permute.xlu0 %1803
        %1805 = vrot.lane.b32.xlu0 %v795, 96
        %v1806 = vpop.permute.xlu0 %1805
        %1807 = vrot.lane.b32.xlu0 %v797, 96
        %v1808 = vpop.permute.xlu0 %1807
        %v1809 = vsel %vm1682, %v1798, %v1804
        %v1810 = vsel %vm1682, %v1800, %v1806
        %v1811 = vsel %vm1682, %v1802, %v1808
        %v1812 = vsel %vm1682, %v1804, %v1798
        %v1813 = vsel %vm1682, %v1806, %v1800
        %v1814 = vsel %vm1682, %v1808, %v1802
        %1815 = vset.pattern.permute.xlu0 23
        %1816 = vperm.xlu0 %1815, %v684
        %v1817 = vpop.permute.xlu0 %1816
        %1819 = vset.pattern.permute.xlu0 23
        %1820 = vperm.xlu0 %1819, %v685
        %v1821 = vpop.permute.xlu0 %1820
        %1823 = vset.pattern.permute.xlu0 23
        %1824 = vperm.xlu0 %1823, %v686
        %v1825 = vpop.permute.xlu0 %1824
        %v1827 = vmul.f32 %v1809, %v1817
        %v1828 = vmul.f32 %v1812, %v1817
        %v1829 = vmul.f32 %v1810, %v1821
        %v1830 = vmul.f32 %v1813, %v1821
        %v1831 = vmul.f32 %v1811, %v1825
        %v1832 = vmul.f32 %v1814, %v1825
        %v1833 = vadd.f32 %v1791, %v1827
        %v1834 = vadd.f32 %v1792, %v1828
        %v1835 = vadd.f32 %v1793, %v1829
        %v1836 = vadd.f32 %v1794, %v1830
        %v1837 = vadd.f32 %v1795, %v1831
        %v1838 = vadd.f32 %v1796, %v1832
        %1839 = vrot.lane.b32.xlu0 %v830, 96
        %v1840 = vpop.permute.xlu0 %1839
        %1841 = vrot.lane.b32.xlu0 %v832, 96
        %v1842 = vpop.permute.xlu0 %1841
        %1843 = vrot.lane.b32.xlu0 %v834, 96
        %v1844 = vpop.permute.xlu0 %1843
        %1845 = vrot.lane.b32.xlu0 %v831, 96
        %v1846 = vpop.permute.xlu0 %1845
        %1847 = vrot.lane.b32.xlu0 %v833, 96
        %v1848 = vpop.permute.xlu0 %1847
        %1849 = vrot.lane.b32.xlu0 %v835, 96
        %v1850 = vpop.permute.xlu0 %1849
        %v1851 = vsel %vm1682, %v1840, %v1846
        %v1852 = vsel %vm1682, %v1842, %v1848
        %v1853 = vsel %vm1682, %v1844, %v1850
        %v1854 = vsel %vm1682, %v1846, %v1840
        %v1855 = vsel %vm1682, %v1848, %v1842
        %v1856 = vsel %vm1682, %v1850, %v1844
        %1857 = vset.pattern.permute.xlu0 24
        %1858 = vperm.xlu0 %1857, %v684
        %v1859 = vpop.permute.xlu0 %1858
        %1861 = vset.pattern.permute.xlu0 24
        %1862 = vperm.xlu0 %1861, %v685
        %v1863 = vpop.permute.xlu0 %1862
        %1865 = vset.pattern.permute.xlu0 24
        %1866 = vperm.xlu0 %1865, %v686
        %v1867 = vpop.permute.xlu0 %1866
        %v1869 = vmul.f32 %v1851, %v1859
        %v1870 = vmul.f32 %v1854, %v1859
        %v1871 = vmul.f32 %v1852, %v1863
        %v1872 = vmul.f32 %v1855, %v1863
        %v1873 = vmul.f32 %v1853, %v1867
        %v1874 = vmul.f32 %v1856, %v1867
        %v1875 = vadd.f32 %v1833, %v1869
        %v1876 = vadd.f32 %v1834, %v1870
        %v1877 = vadd.f32 %v1835, %v1871
        %v1878 = vadd.f32 %v1836, %v1872
        %v1879 = vadd.f32 %v1837, %v1873
        %v1880 = vadd.f32 %v1838, %v1874
        %s1881 = scalar_lea.vmem [#allocation12], 4
        %v1882 = vld [vmem:[%s1881] ss:$8 sm:$0x3]
        %v1884 = vlaneseq
        %v1885 = vshrl.u32 %v1884, 7
        %v1886 = vsub.s32 0, %v1885
        %v1887 = vrot.slane %v1882, %v1886
        %v1888 = vlaneseq
        %v1889 = vshrl.u32 %v1888, 7
        %v1890 = vsub.s32 1, %v1889
        %v1891 = vrot.slane %v1882, %v1890
        %v1894 = vmul.f32 %v1875, %v1887
        %v1895 = vmul.f32 %v1876, %v1891
        %v1896 = vmul.f32 %v1877, %v1887
        %v1897 = vmul.f32 %v1878, %v1891
        %v1898 = vmul.f32 %v1879, %v1887
        %v1899 = vmul.f32 %v1880, %v1891
        %v1900 = vadd.f32 %v1664, %v1894
        %v1901 = vadd.f32 %v1665, %v1895
        %v1902 = vadd.f32 %v1666, %v1896
        %v1903 = vadd.f32 %v1667, %v1897
        %v1904 = vadd.f32 %v1668, %v1898
        %v1905 = vadd.f32 %v1669, %v1899
        %vm1906 = vcmp.gt.f32.partialorder %v1900, 0.0
        %vm1907 = vcmp.gt.f32.partialorder %v1901, 0.0
        %vm1908 = vcmp.gt.f32.partialorder %v1902, 0.0
        %vm1909 = vcmp.gt.f32.partialorder %v1903, 0.0
        %vm1910 = vcmp.gt.f32.partialorder %v1904, 0.0
        %vm1911 = vcmp.gt.f32.partialorder %v1905, 0.0
        %v1912 = vmul.f32 %v1900, 1.442695
        %v1913 = vpow.pop %v1912
        %v1914 = vmul.f32 %v1901, 1.442695
        %v1915 = vpow.pop %v1914
        %v1916 = vmul.f32 %v1902, 1.442695
        %v1917 = vpow.pop %v1916
        %v1918 = vmul.f32 %v1903, 1.442695
        %v1919 = vpow.pop %v1918
        %v1920 = vmul.f32 %v1904, 1.442695
        %v1921 = vpow.pop %v1920
        %v1922 = vmul.f32 %v1905, 1.442695
        %v1923 = vpow.pop %v1922
        %v1924 = vsub.f32 %v1913, 1.0
        %v1925 = vsub.f32 %v1915, 1.0
        %v1926 = vsub.f32 %v1917, 1.0
        %v1927 = vsub.f32 %v1919, 1.0
        %v1928 = vsub.f32 %v1921, 1.0
        %v1929 = vsub.f32 %v1923, 1.0
        %v1930 = vsel %vm1906, %v1900, %v1924
        %v1931 = vsel %vm1907, %v1901, %v1925
        %v1932 = vsel %vm1908, %v1902, %v1926
        %v1933 = vsel %vm1909, %v1903, %v1927
        %v1934 = vsel %vm1910, %v1904, %v1928
        %v1935 = vsel %vm1911, %v1905, %v1929
        %1936 = vst [vmem:[%s336] sm:$0xff] %v1930
        %1937 = vst [vmem:[%s336 + $0x8] sm:$0xff] %v1931
        %1938 = vst [vmem:[%s336 + $0x10] sm:$0xff] %v1932
        %1939 = vst [vmem:[%s336 + $0x18] sm:$0xff] %v1933
        %1940 = vst [vmem:[%s336 + $0x20] sm:$0xff] %v1934
        %1941 = vst [vmem:[%s336 + $0x28] sm:$0xff] %v1935
        %s1942 = sand.u32 %s165, 1
        %s1943 = scalar_lea.sflag [#allocation5], %s1942
        %s1944 = sand.u32 %s165, 1
        %s1945 = smul.addr %s1944, 48
        %s1946 = scalar_lea.vmem [#allocation14], %s1945
        // Predicated region
        $region69: #{tpu_custom_call.1} parent=43 // pred_check
          %p1947 = pneg %p175
        $region70: #{tpu_custom_call.1} parent=43 // pred_check_branch
          %1949 = sbr.rel (%p1947) target = $region72
        $region71: #{tpu_custom_call.1} parent=43 // pred_region
          %s1951 = ssub.s32 768, 768
          %1952 = vsyncadd %s1943, %s1951
          %s1953 = smul.addr %s26, 6
          %s1954 = smul.addr %s1953, 128
          %s1955 = scalar_lea.hbm %s6, %s1954
          %s1956 = sshll.u32 %s1946, 4
          %s1957 = int_to_ptr.vmem [resolvable:$true] %s1956
          %1962 = dma.vmem_to_hbm [thread:$0]  %s1957, 768, %s1955, %s1943, 256, 256, 16
        $region72: #{tpu_custom_call.1} parent=43 // pred_fallthru
          _
      $region44: #{tpu_custom_call.1} parent=5 // pred_fallthru
        _
      %p1963 = scmp.le.s32.totalorder 2, %s21
      // Predicated region
      $region73: #{tpu_custom_call.1} parent=5 // pred_check
        %p1964 = pneg %p1963
      $region74: #{tpu_custom_call.1} parent=5 // pred_check_branch
        %1966 = sbr.rel (%p1964) target = $region76
      $region75: #{tpu_custom_call.1} parent=5 // pred_region
        %s1967 = ssub.s32 %s21, 2
        // Predicated region
        $region77: #{tpu_custom_call.1} parent=75 // pred_check
          %p1968 = pneg %p181
        $region78: #{tpu_custom_call.1} parent=75 // pred_check_branch
          %1970 = sbr.rel (%p1968) target = $region80
        $region79: #{tpu_custom_call.1} parent=75 // pred_region
          %s1971 = sand.u32 %s166, 1
          %s1972 = scalar_lea.sflag [#allocation5], %s1971
          %s1973 = sand.u32 %s166, 1
          %s1974 = smul.addr %s1973, 48
          %s1975 = scalar_lea.vmem [#allocation14], %s1974
          %1976 = dma.done %s1972, 768
        $region80: #{tpu_custom_call.1} parent=75 // pred_fallthru
          _
      $region76: #{tpu_custom_call.1} parent=5 // pred_fallthru
        _
    $region6: #{tpu_custom_call.1} parent=1 // loop_footer
      %s25 = sadd.s32 1, %s21
    $region7: #{tpu_custom_call.1} parent=1 // loop_footer_branch
      %20 = sbr.rel target = $region3
    $region8: #{tpu_custom_call.1} parent=1 // loop_exit
      _
    %1977 = vsyncpa [#allocation4], 1
    %s1978 = scalar_lea.sflag [#allocation4], 1
    %1979 = vsyncpa %s1978, 1
    %1980 = vsyncpa [#allocation7], 1
    %1981 = vsyncpa [#allocation10], 1
    %1982 = vsyncpa [#allocation13], 1
    %1983 = vsyncpa [#allocation5], 1
    %s1984 = scalar_lea.sflag [#allocation5], 1
    %1985 = vsyncpa %s1984, 1

</llo_original>
